<compile_context>
chip_gen: v5e
topology: v5e:2x2
jax: 0.10.0
libtpu: 0.0.40
codegen_flags: <defaults>
</compile_context>

<pallas_src>
import functools
import math

import jax
import jax.numpy as jnp
from jax import lax, random
from jax.experimental import pallas as pl
from jax.experimental.pallas import tpu as pltpu

T_BLK = 8          # variables processed per inner block (sublane tile height)
LANES = 128        # packed lane width (K * B_BLK)


def _mixing_kernel(cdiag_ref,                        # SMEM prefetch (NB*64,) f32: C diag blocks
                   c_ref, ccol_ref, free_ref, vinit_ref,   # VMEM inputs
                   dot_ref,                          # VMEM output (NTOT, B_BLK)
                   v_ref, g_ref, dv_scr,             # VMEM scratch
                   delta_ref,                        # SMEM scratch (1,) f32
                   *, n_tot, b_blk, k_dim, max_iter, eps):
    nb = n_tot // T_BLK
    norm_shifts = tuple(b_blk * (1 << j) for j in range(int(math.log2(k_dim))))

    v_ref[...] = vinit_ref[...]
    delta_ref[0] = jnp.float32(1e30)

    def class_sum(x):
        # All-reduce within each lane residue class (one class of k_dim lanes per
        # packed sample): log2(k) roll+add butterfly, rolls stay in-class because
        # shifts are multiples of b_blk.
        for s in norm_shifts:
            x = x + pltpu.roll(x, s, axis=1)
        return x

    def sweep(_, carry):
        # Early-stop: skip further sweeps once the per-sweep change is below eps.
        # TODO(synk): reference SATNet (CUDA) uses its own convergence metric; here
        # the sum of squared per-variable updates over the packed block is used —
        # the converged fixed point is identical.
        @pl.when(delta_ref[0] > eps)
        def _():
            # Refresh G = C @ V once per sweep (bounds rounding drift of the
            # incremental per-block updates below).  C has zero diagonal, so
            # G[i] = sum_{j!=i} C_ij v_j.
            g_ref[...] = jnp.dot(c_ref[...], v_ref[...],
                                 preferred_element_type=jnp.float32)

            def block_body(t, dacc):
                i0 = pl.multiple_of(t * T_BLK, T_BLK)
                gb = g_ref[pl.ds(i0, T_BLK), :]          # (8, 128)
                vb = v_ref[pl.ds(i0, T_BLK), :]          # (8, 128)
                fb = free_ref[pl.ds(i0, T_BLK), :]       # (8, 128) float mask
                g_rows = [gb[p:p + 1, :] for p in range(T_BLK)]
                sbase = t * (T_BLK * T_BLK)

                for p in range(T_BLK):                   # static unroll
                    gp = g_rows[p]
                    gn2 = class_sum(gp * gp)             # per-sample ||g||^2, bcast on lanes
                    inv = lax.rsqrt(jnp.maximum(gn2, 1e-30))
                    v_old = vb[p:p + 1, :]
                    # keep the old (unit) vector if g is numerically zero
                    cand = jnp.where(gn2 > 1e-20, -gp * inv, v_old)
                    dv = fb[p:p + 1, :] * (cand - v_old)   # clamped inputs: dv = 0
                    dv_scr[pl.ds(p, 1), :] = dv
                    # Gauss-Seidel coupling to later variables in this block.
                    for p2 in range(p + 1, T_BLK):
                        cpq = cdiag_ref[sbase + p2 * T_BLK + p]
                        g_rows[p2] = g_rows[p2] + cpq * dv

                dv_blk = dv_scr[...]                     # (8, 128)
                v_ref[pl.ds(i0, T_BLK), :] = vb + dv_blk
                # Rank-8 update so later blocks see the new V rows:
                #   G += C[:, i0:i0+8] @ dV   (C[:, blk] precomputed, lane-padded)
                g_ref[...] = g_ref[...] + jnp.dot(
                    ccol_ref[t], dv_blk, preferred_element_type=jnp.float32)
                return dacc + dv_blk * dv_blk

            dvec = lax.fori_loop(0, nb, block_body,
                                 jnp.zeros((T_BLK, LANES), jnp.float32))
            delta_ref[0] = jnp.sum(dvec)                 # one cross-lane reduce per sweep
        return carry

    lax.fori_loop(0, max_iter, sweep, 0)

    # Readout: per-sample v_i . v_truth (truth vector = row 0, clamped by mask).
    vall = v_ref[...]
    prod = vall * vall[0:1, :]
    dot_ref[...] = class_sum(prod)[:, 0:b_blk]


def satnet_mixing(c_nodiag, c_colblk, cdiag_flat, free_packed, v_packed,
                  *, k_dim, b_blk, max_iter=100, eps=1e-6):
    """Run the mixing method on TPU on lane-packed blocks of b_blk samples."""
    nblk, NTOT, L = v_packed.shape
    assert L == LANES and NTOT % T_BLK == 0
    NB = NTOT // T_BLK

    kernel = functools.partial(_mixing_kernel, n_tot=NTOT, b_blk=b_blk,
                               k_dim=k_dim, max_iter=max_iter, eps=eps)
    grid_spec = pltpu.PrefetchScalarGridSpec(
        num_scalar_prefetch=1,
        grid=(nblk,),
        in_specs=[
            pl.BlockSpec((NTOT, NTOT), lambda g, cd: (0, 0)),        # C (shared)
            pl.BlockSpec((NB, NTOT, T_BLK), lambda g, cd: (0, 0, 0)),  # C column blocks
            pl.BlockSpec((None, NTOT, L), lambda g, cd: (g, 0, 0)),  # free mask (float)
            pl.BlockSpec((None, NTOT, L), lambda g, cd: (g, 0, 0)),  # packed V init
        ],
        out_specs=pl.BlockSpec((None, NTOT, b_blk), lambda g, cd: (g, 0, 0)),
        scratch_shapes=[
            pltpu.VMEM((NTOT, L), jnp.float32),    # V (never written back to HBM)
            pltpu.VMEM((NTOT, L), jnp.float32),    # G = C @ V
            pltpu.VMEM((T_BLK, L), jnp.float32),   # dV staging for the block matmul
            pltpu.SMEM((1,), jnp.float32),         # convergence delta
        ],
    )
    dots = pl.pallas_call(
        kernel,
        out_shape=jax.ShapeDtypeStruct((nblk, NTOT, b_blk), jnp.float32),
        grid_spec=grid_spec,
        compiler_params=pltpu.CompilerParams(
            dimension_semantics=("parallel",)),
    )(cdiag_flat, c_nodiag, c_colblk, free_packed, v_packed)
    return dots


class SudokuSolver:
    """JAX/Pallas port of exps/sudoku.py::SudokuSolver (satnet.SATNet(n, m, aux))."""

    def __init__(self, boardSz, aux, m, key):
        self.n = boardSz ** 6
        self.aux = aux
        self.m = m
        self.n_tot = self.n + 1 + aux                    # truth + problem vars + aux
        assert self.n_tot % T_BLK == 0, "pick aux so that n+1+aux is sublane-aligned"
        # SDP embedding dim >= sqrt(2*n_tot), rounded up to a power of two (>=8)
        # so that 128 / k samples pack exactly into the 128-lane axis.
        k_raw = int(math.ceil(math.sqrt(2.0 * self.n_tot)))
        k = 8
        while k < k_raw:
            k *= 2
        assert k <= LANES and LANES % k == 0
        self.k = k
        self.b_blk = LANES // k
        k_s, self.init_key = random.split(key)
        # S init matches satnet: normal * sqrt(0.5 / n_tot)   (weight_normalize=True)
        self.S = random.normal(k_s, (self.n_tot, m), jnp.float32) * jnp.sqrt(0.5 / self.n_tot)
        self.max_iter = 100
        self.eps = 1e-6

    def __call__(self, y_in, mask):
        B, n = y_in.shape
        assert n == self.n
        NTOT, K, B_BLK = self.n_tot, self.k, self.b_blk
        y_in = y_in.astype(jnp.float32)

        # Pad the batch to a multiple of the lane-packed block; padded samples are
        # fully clamped (mask=1) so they never move and never produce NaNs.
        B_pad = ((B + B_BLK - 1) // B_BLK) * B_BLK
        pad = B_pad - B
        y = jnp.pad(y_in, ((0, pad), (0, 0)))
        msk = jnp.pad(mask.astype(jnp.int32), ((0, pad), (0, 0)), constant_values=1)

        z_all = jnp.concatenate(
            [jnp.ones((B_pad, 1), jnp.float32), y,
             jnp.zeros((B_pad, self.aux), jnp.float32)], axis=1)
        is_input_all = jnp.concatenate(
            [jnp.ones((B_pad, 1), jnp.int32), msk,
             jnp.zeros((B_pad, self.aux), jnp.int32)], axis=1)

        # Coupling matrix with zeroed diagonal (so g_i = sum_{j!=i} C_ij v_j).
        C = self.S @ self.S.T
        C = (C - jnp.diag(jnp.diagonal(C))).astype(jnp.float32)

        # Deterministic sphere init (the CUDA reference uses its own RNG; cannot be bit-matched).
        vr = random.normal(self.init_key, (B_pad, NTOT, K), jnp.float32)
        vr = vr / jnp.linalg.norm(vr, axis=-1, keepdims=True)
        v0 = vr[:, 0:1, :]                                         # truth direction
        proj = jnp.sum(vr * v0, axis=-1, keepdims=True)
        perp = vr - proj * v0
        perp = perp / (jnp.linalg.norm(perp, axis=-1, keepdims=True) + 1e-12)
        v_cos = (-jnp.cos(jnp.pi * z_all)[..., None] * v0
                 + jnp.sin(jnp.pi * z_all)[..., None] * perp)
        v_init = jnp.where(is_input_all[..., None] == 1, v_cos, vr)
        v_init = v_init.at[:, 0, :].set(v0[:, 0, :])               # truth var exactly v0

        # ---- lane packing: lane = k*B_BLK + b -------------------------------
        nblk = B_pad // B_BLK
        v_packed = (v_init.reshape(nblk, B_BLK, NTOT, K)
                    .transpose(0, 2, 3, 1).reshape(nblk, NTOT, K * B_BLK))
        free = (1 - is_input_all).astype(jnp.float32)              # 1 = free to move
        free_p = free.reshape(nblk, B_BLK, NTOT).transpose(0, 2, 1)
        free_packed = jnp.broadcast_to(
            free_p[:, :, None, :], (nblk, NTOT, K, B_BLK)).reshape(nblk, NTOT, K * B_BLK)

        # ---- per-block views of C used inside the kernel --------------------
        nb = NTOT // T_BLK
        c_colblk = C.reshape(NTOT, nb, T_BLK).transpose(1, 0, 2)   # c_colblk[t] = C[:, t*8:(t+1)*8]
        cdiag = jnp.einsum('tptq->tpq', C.reshape(nb, T_BLK, nb, T_BLK))   # 8x8 diag blocks
        cdiag_flat = cdiag.reshape(-1).astype(jnp.float32)

        dots = satnet_mixing(C, c_colblk, cdiag_flat, free_packed, v_packed,
                             k_dim=K, b_blk=B_BLK,
                             max_iter=self.max_iter, eps=self.eps)  # (nblk, NTOT, B_BLK)
        dots = dots.transpose(0, 2, 1).reshape(B_pad, NTOT)[:B]

        neg_dot = jnp.clip(-dots[:, 1:n + 1], -1.0, 1.0)
        return jnp.arccos(neg_dot) / jnp.pi                        # (B, n) in [0, 1]


if __name__ == "__main__":
    boardSz = 2                    # n = boardSz**6 = 64  (small)
    aux, m = 31, 96                # n + 1 + aux = 96 (multiple of 8)
    B = 2

    key = random.PRNGKey(0)
    k_model, k_y, k_mask = random.split(key, 3)

    solver = SudokuSolver(boardSz, aux, m, k_model)
    n = boardSz ** 6
    y_in = random.uniform(k_y, (B, n), jnp.float32)
    mask = (random.uniform(k_mask, (B, n)) < 0.5).astype(jnp.int32)

    out = solver(y_in, mask)
    out = jax.block_until_ready(out)

    assert out.shape == (B, n)
    assert bool(jnp.all(jnp.isfinite(out)))
    assert bool(jnp.all((out >= 0.0) & (out <= 1.0)))
    print("KERNEL_OK")
</pallas_src>

<mosaic_0001>
module attributes {stable_mosaic.version = 11 : i64} {
  func.func @_mixing_kernel(%arg0: i32, %arg1: memref<768xf32, #tpu.memory_space<smem>>, %arg2: memref<96x96xf32, #tpu.memory_space<vmem>>, %arg3: memref<12x96x8xf32, #tpu.memory_space<vmem>>, %arg4: memref<1x96x128xf32, #tpu.memory_space<vmem>>, %arg5: memref<1x96x128xf32, #tpu.memory_space<vmem>>, %arg6: memref<1x96x8xf32, #tpu.memory_space<vmem>>, %arg7: memref<96x128xf32, #tpu.memory_space<vmem>>, %arg8: memref<96x128xf32, #tpu.memory_space<vmem>>, %arg9: memref<8x128xf32, #tpu.memory_space<vmem>>, %arg10: memref<1xf32, #tpu.memory_space<smem>>) attributes {dimension_semantics = [#tpu.dimension_semantics<parallel>], iteration_bounds = array<i64: 1>, scalar_prefetch = 1 : i64, scratch_operands = 4 : i64, tpu.core_type = #tpu.core_type<tc>, window_params = [{pipeline_mode = #tpu.pipeline_mode<synchronous>, transform_indices = @transform_0, window_bounds = array<i64: 96, 96>}, {pipeline_mode = #tpu.pipeline_mode<synchronous>, transform_indices = @transform_1, window_bounds = array<i64: 12, 96, 8>}, {transform_indices = @transform_2, window_bounds = array<i64: 1, 96, 128>}, {transform_indices = @transform_3, window_bounds = array<i64: 1, 96, 128>}, {transform_indices = @transform_4, window_bounds = array<i64: 1, 96, 8>}]} {
    %c0 = arith.constant 0 : index
    %c0_0 = arith.constant 0 : index
    %c0_1 = arith.constant 0 : index
    %0 = vector.load %arg5[%c0, %c0_0, %c0_1] : memref<1x96x128xf32, #tpu.memory_space<vmem>>, vector<1x96x128xf32>
    %1 = vector.shape_cast %0 : vector<1x96x128xf32> to vector<96x128xf32>
    %c0_2 = arith.constant 0 : index
    %c0_3 = arith.constant 0 : index
    %2 = vector.load %arg7[%c0_2, %c0_3] : memref<96x128xf32, #tpu.memory_space<vmem>>, vector<96x128xf32>
    tpu.vector_store %arg7[%c0_2, %c0_3], %1 {strides = array<i32>} : memref<96x128xf32, #tpu.memory_space<vmem>>, vector<96x128xf32>,
    %cst = arith.constant 1.000000e+30 : f32
    %c0_4 = arith.constant 0 : index
    %3 = memref.load %arg10[%c0_4] : memref<1xf32, #tpu.memory_space<smem>>
    memref.store %cst, %arg10[%c0_4] : memref<1xf32, #tpu.memory_space<smem>>
    %c0_i32 = arith.constant 0 : i32
    %c100_i32 = arith.constant 100 : i32
    %4 = arith.addi %c0_i32, %c100_i32 : i32
    %c1_i32 = arith.constant 1 : i32
    scf.for %arg11 = %c0_i32 to %4 step %c1_i32  : i32 {
      %c0_10 = arith.constant 0 : index
      %21 = memref.load %arg10[%c0_10] : memref<1xf32, #tpu.memory_space<smem>>
      %cst_11 = arith.constant 9.99999997E-7 : f32
      %22 = arith.cmpf ogt, %21, %cst_11 : f32
      %23 = arith.extui %22 : i1 to i32
      %c0_i32_12 = arith.constant 0 : i32
      %24 = arith.cmpi ne, %23, %c0_i32_12 : i32
      scf.if %24 {
        %c0_13 = arith.constant 0 : index
        %c0_14 = arith.constant 0 : index
        %25 = vector.load %arg2[%c0_13, %c0_14] : memref<96x96xf32, #tpu.memory_space<vmem>>, vector<96x96xf32>
        %c0_15 = arith.constant 0 : index
        %c0_16 = arith.constant 0 : index
        %26 = vector.load %arg7[%c0_15, %c0_16] : memref<96x128xf32, #tpu.memory_space<vmem>>, vector<96x128xf32>
        %cst_17 = arith.constant dense<0.000000e+00> : vector<96x128xf32>
        %27 = tpu.matmul %25, %26, %cst_17 {dimension_numbers = #tpu.dot_dimension_numbers<[1], [0], [0], [1], [0, 0, 1, 1], [], []>} : vector<96x96xf32>, vector<96x128xf32>, vector<96x128xf32> -> vector<96x128xf32>
        %c0_18 = arith.constant 0 : index
        %c0_19 = arith.constant 0 : index
        %28 = vector.load %arg8[%c0_18, %c0_19] : memref<96x128xf32, #tpu.memory_space<vmem>>, vector<96x128xf32>
        tpu.vector_store %arg8[%c0_18, %c0_19], %27 {strides = array<i32>} : memref<96x128xf32, #tpu.memory_space<vmem>>, vector<96x128xf32>,
        %cst_20 = arith.constant 0.000000e+00 : f32
        %29 = vector.broadcast %cst_20 : f32 to vector<8x128xf32>
        %c0_i32_21 = arith.constant 0 : i32
        %c12_i32 = arith.constant 12 : i32
        %30 = arith.addi %c0_i32_21, %c12_i32 : i32
        %c1_i32_22 = arith.constant 1 : i32
        %31 = scf.for %arg12 = %c0_i32_21 to %30 step %c1_i32_22 iter_args(%arg13 = %29) -> (vector<8x128xf32>)  : i32 {
          %c8_i32_26 = arith.constant 8 : i32
          %37 = arith.muli %arg12, %c8_i32_26 : i32
          %38 = tpu.assume_multiple %37, 8 : i32
          %39 = arith.index_cast %38 : i32 to index
          %c0_27 = arith.constant 0 : index
          %40 = vector.load %arg8[%39, %c0_27] : memref<96x128xf32, #tpu.memory_space<vmem>>, vector<8x128xf32>
          %41 = arith.index_cast %38 : i32 to index
          %c0_28 = arith.constant 0 : index
          %42 = vector.load %arg7[%41, %c0_28] : memref<96x128xf32, #tpu.memory_space<vmem>>, vector<8x128xf32>
          %c0_29 = arith.constant 0 : index
          %43 = arith.index_cast %38 : i32 to index
          %c0_30 = arith.constant 0 : index
          %44 = vector.load %arg4[%c0_29, %43, %c0_30] : memref<1x96x128xf32, #tpu.memory_space<vmem>>, vector<1x8x128xf32>
          %45 = vector.shape_cast %44 : vector<1x8x128xf32> to vector<8x128xf32>
          %46 = vector.extract_strided_slice %40 {offsets = [0, 0], sizes = [1, 128], strides = [1, 1]} : vector<8x128xf32> to vector<1x128xf32>
          %47 = vector.extract_strided_slice %40 {offsets = [1, 0], sizes = [1, 128], strides = [1, 1]} : vector<8x128xf32> to vector<1x128xf32>
          %48 = vector.extract_strided_slice %40 {offsets = [2, 0], sizes = [1, 128], strides = [1, 1]} : vector<8x128xf32> to vector<1x128xf32>
          %49 = vector.extract_strided_slice %40 {offsets = [3, 0], sizes = [1, 128], strides = [1, 1]} : vector<8x128xf32> to vector<1x128xf32>
          %50 = vector.extract_strided_slice %40 {offsets = [4, 0], sizes = [1, 128], strides = [1, 1]} : vector<8x128xf32> to vector<1x128xf32>
          %51 = vector.extract_strided_slice %40 {offsets = [5, 0], sizes = [1, 128], strides = [1, 1]} : vector<8x128xf32> to vector<1x128xf32>
          %52 = vector.extract_strided_slice %40 {offsets = [6, 0], sizes = [1, 128], strides = [1, 1]} : vector<8x128xf32> to vector<1x128xf32>
          %53 = vector.extract_strided_slice %40 {offsets = [7, 0], sizes = [1, 128], strides = [1, 1]} : vector<8x128xf32> to vector<1x128xf32>
          %c64_i32_31 = arith.constant 64 : i32
          %54 = arith.muli %arg12, %c64_i32_31 : i32
          %55 = arith.mulf %46, %46 : vector<1x128xf32>
          %c8_i32_32 = arith.constant 8 : i32
          %56 = tpu.dynamic_rotate %55 by %c8_i32_32 dim 1 : vector<1x128xf32>, i32 -> vector<1x128xf32>
          %57 = arith.addf %55, %56 : vector<1x128xf32>
          %c16_i32_33 = arith.constant 16 : i32
          %58 = tpu.dynamic_rotate %57 by %c16_i32_33 dim 1 : vector<1x128xf32>, i32 -> vector<1x128xf32>
          %59 = arith.addf %57, %58 : vector<1x128xf32>
          %c32_i32_34 = arith.constant 32 : i32
          %60 = tpu.dynamic_rotate %59 by %c32_i32_34 dim 1 : vector<1x128xf32>, i32 -> vector<1x128xf32>
          %61 = arith.addf %59, %60 : vector<1x128xf32>
          %c64_i32_35 = arith.constant 64 : i32
          %62 = tpu.dynamic_rotate %61 by %c64_i32_35 dim 1 : vector<1x128xf32>, i32 -> vector<1x128xf32>
          %63 = arith.addf %61, %62 : vector<1x128xf32>
          %cst_36 = arith.constant 1.000000e-30 : f32
          %64 = vector.broadcast %cst_36 : f32 to vector<1x128xf32>
          %65 = arith.maximumf %63, %64 : vector<1x128xf32>
          %66 = math.rsqrt %65 : vector<1x128xf32>
          %67 = vector.extract_strided_slice %42 {offsets = [0, 0], sizes = [1, 128], strides = [1, 1]} : vector<8x128xf32> to vector<1x128xf32>
          %cst_37 = arith.constant 9.99999968E-21 : f32
          %68 = vector.broadcast %cst_37 : f32 to vector<1x128xf32>
          %69 = arith.cmpf ogt, %63, %68 : vector<1x128xf32>
          %cst_38 = arith.constant 0.000000e+00 : f32
          %70 = vector.broadcast %cst_38 : f32 to vector<1x128xf32>
          %71 = arith.subf %70, %46 : vector<1x128xf32>
          %72 = arith.mulf %71, %66 : vector<1x128xf32>
          %73 = arith.select %69, %72, %67 : vector<1x128xi1>, vector<1x128xf32>
          %74 = vector.extract_strided_slice %45 {offsets = [0, 0], sizes = [1, 128], strides = [1, 1]} : vector<8x128xf32> to vector<1x128xf32>
          %75 = arith.subf %73, %67 : vector<1x128xf32>
          %76 = arith.mulf %74, %75 : vector<1x128xf32>
          %c0_39 = arith.constant 0 : index
          %c0_40 = arith.constant 0 : index
          %77 = vector.load %arg9[%c0_39, %c0_40] : memref<8x128xf32, #tpu.memory_space<vmem>>, vector<1x128xf32>
          tpu.vector_store %arg9[%c0_39, %c0_40], %76 {strides = array<i32>} : memref<8x128xf32, #tpu.memory_space<vmem>>, vector<1x128xf32>,
          %c8_i32_41 = arith.constant 8 : i32
          %78 = arith.addi %54, %c8_i32_41 : i32
          %c0_i32_42 = arith.constant 0 : i32
          %79 = arith.addi %78, %c0_i32_42 : i32
          %80 = arith.index_cast %79 : i32 to index
          %81 = memref.load %arg1[%80] : memref<768xf32, #tpu.memory_space<smem>>
          %82 = vector.broadcast %81 : f32 to vector<1x128xf32>
          %83 = arith.mulf %82, %76 : vector<1x128xf32>
          %84 = arith.addf %47, %83 : vector<1x128xf32>
          %c16_i32_43 = arith.constant 16 : i32
          %85 = arith.addi %54, %c16_i32_43 : i32
          %c0_i32_44 = arith.constant 0 : i32
          %86 = arith.addi %85, %c0_i32_44 : i32
          %87 = arith.index_cast %86 : i32 to index
          %88 = memref.load %arg1[%87] : memref<768xf32, #tpu.memory_space<smem>>
          %89 = vector.broadcast %88 : f32 to vector<1x128xf32>
          %90 = arith.mulf %89, %76 : vector<1x128xf32>
          %91 = arith.addf %48, %90 : vector<1x128xf32>
          %c24_i32 = arith.constant 24 : i32
          %92 = arith.addi %54, %c24_i32 : i32
          %c0_i32_45 = arith.constant 0 : i32
          %93 = arith.addi %92, %c0_i32_45 : i32
          %94 = arith.index_cast %93 : i32 to index
          %95 = memref.load %arg1[%94] : memref<768xf32, #tpu.memory_space<smem>>
          %96 = vector.broadcast %95 : f32 to vector<1x128xf32>
          %97 = arith.mulf %96, %76 : vector<1x128xf32>
          %98 = arith.addf %49, %97 : vector<1x128xf32>
          %c32_i32_46 = arith.constant 32 : i32
          %99 = arith.addi %54, %c32_i32_46 : i32
          %c0_i32_47 = arith.constant 0 : i32
          %100 = arith.addi %99, %c0_i32_47 : i32
          %101 = arith.index_cast %100 : i32 to index
          %102 = memref.load %arg1[%101] : memref<768xf32, #tpu.memory_space<smem>>
          %103 = vector.broadcast %102 : f32 to vector<1x128xf32>
          %104 = arith.mulf %103, %76 : vector<1x128xf32>
          %105 = arith.addf %50, %104 : vector<1x128xf32>
          %c40_i32 = arith.constant 40 : i32
          %106 = arith.addi %54, %c40_i32 : i32
          %c0_i32_48 = arith.constant 0 : i32
          %107 = arith.addi %106, %c0_i32_48 : i32
          %108 = arith.index_cast %107 : i32 to index
          %109 = memref.load %arg1[%108] : memref<768xf32, #tpu.memory_space<smem>>
          %110 = vector.broadcast %109 : f32 to vector<1x128xf32>
          %111 = arith.mulf %110, %76 : vector<1x128xf32>
          %112 = arith.addf %51, %111 : vector<1x128xf32>
          %c48_i32 = arith.constant 48 : i32
          %113 = arith.addi %54, %c48_i32 : i32
          %c0_i32_49 = arith.constant 0 : i32
          %114 = arith.addi %113, %c0_i32_49 : i32
          %115 = arith.index_cast %114 : i32 to index
          %116 = memref.load %arg1[%115] : memref<768xf32, #tpu.memory_space<smem>>
          %117 = vector.broadcast %116 : f32 to vector<1x128xf32>
          %118 = arith.mulf %117, %76 : vector<1x128xf32>
          %119 = arith.addf %52, %118 : vector<1x128xf32>
          %c56_i32 = arith.constant 56 : i32
          %120 = arith.addi %54, %c56_i32 : i32
          %c0_i32_50 = arith.constant 0 : i32
          %121 = arith.addi %120, %c0_i32_50 : i32
          %122 = arith.index_cast %121 : i32 to index
          %123 = memref.load %arg1[%122] : memref<768xf32, #tpu.memory_space<smem>>
          %124 = vector.broadcast %123 : f32 to vector<1x128xf32>
          %125 = arith.mulf %124, %76 : vector<1x128xf32>
          %126 = arith.addf %53, %125 : vector<1x128xf32>
          %127 = arith.mulf %84, %84 : vector<1x128xf32>
          %c8_i32_51 = arith.constant 8 : i32
          %128 = tpu.dynamic_rotate %127 by %c8_i32_51 dim 1 : vector<1x128xf32>, i32 -> vector<1x128xf32>
          %129 = arith.addf %127, %128 : vector<1x128xf32>
          %c16_i32_52 = arith.constant 16 : i32
          %130 = tpu.dynamic_rotate %129 by %c16_i32_52 dim 1 : vector<1x128xf32>, i32 -> vector<1x128xf32>
          %131 = arith.addf %129, %130 : vector<1x128xf32>
          %c32_i32_53 = arith.constant 32 : i32
          %132 = tpu.dynamic_rotate %131 by %c32_i32_53 dim 1 : vector<1x128xf32>, i32 -> vector<1x128xf32>
          %133 = arith.addf %131, %132 : vector<1x128xf32>
          %c64_i32_54 = arith.constant 64 : i32
          %134 = tpu.dynamic_rotate %133 by %c64_i32_54 dim 1 : vector<1x128xf32>, i32 -> vector<1x128xf32>
          %135 = arith.addf %133, %134 : vector<1x128xf32>
          %cst_55 = arith.constant 1.000000e-30 : f32
          %136 = vector.broadcast %cst_55 : f32 to vector<1x128xf32>
          %137 = arith.maximumf %135, %136 : vector<1x128xf32>
          %138 = math.rsqrt %137 : vector<1x128xf32>
          %139 = vector.extract_strided_slice %42 {offsets = [1, 0], sizes = [1, 128], strides = [1, 1]} : vector<8x128xf32> to vector<1x128xf32>
          %cst_56 = arith.constant 9.99999968E-21 : f32
          %140 = vector.broadcast %cst_56 : f32 to vector<1x128xf32>
          %141 = arith.cmpf ogt, %135, %140 : vector<1x128xf32>
          %cst_57 = arith.constant 0.000000e+00 : f32
          %142 = vector.broadcast %cst_57 : f32 to vector<1x128xf32>
          %143 = arith.subf %142, %84 : vector<1x128xf32>
          %144 = arith.mulf %143, %138 : vector<1x128xf32>
          %145 = arith.select %141, %144, %139 : vector<1x128xi1>, vector<1x128xf32>
          %146 = vector.extract_strided_slice %45 {offsets = [1, 0], sizes = [1, 128], strides = [1, 1]} : vector<8x128xf32> to vector<1x128xf32>
          %147 = arith.subf %145, %139 : vector<1x128xf32>
          %148 = arith.mulf %146, %147 : vector<1x128xf32>
          %c1 = arith.constant 1 : index
          %c0_58 = arith.constant 0 : index
          %149 = vector.load %arg9[%c1, %c0_58] : memref<8x128xf32, #tpu.memory_space<vmem>>, vector<1x128xf32>
          tpu.vector_store %arg9[%c1, %c0_58], %148 {strides = array<i32>} : memref<8x128xf32, #tpu.memory_space<vmem>>, vector<1x128xf32>,
          %c16_i32_59 = arith.constant 16 : i32
          %150 = arith.addi %54, %c16_i32_59 : i32
          %c1_i32_60 = arith.constant 1 : i32
          %151 = arith.addi %150, %c1_i32_60 : i32
          %152 = arith.index_cast %151 : i32 to index
          %153 = memref.load %arg1[%152] : memref<768xf32, #tpu.memory_space<smem>>
          %154 = vector.broadcast %153 : f32 to vector<1x128xf32>
          %155 = arith.mulf %154, %148 : vector<1x128xf32>
          %156 = arith.addf %91, %155 : vector<1x128xf32>
          %c24_i32_61 = arith.constant 24 : i32
          %157 = arith.addi %54, %c24_i32_61 : i32
          %c1_i32_62 = arith.constant 1 : i32
          %158 = arith.addi %157, %c1_i32_62 : i32
          %159 = arith.index_cast %158 : i32 to index
          %160 = memref.load %arg1[%159] : memref<768xf32, #tpu.memory_space<smem>>
          %161 = vector.broadcast %160 : f32 to vector<1x128xf32>
          %162 = arith.mulf %161, %148 : vector<1x128xf32>
          %163 = arith.addf %98, %162 : vector<1x128xf32>
          %c32_i32_63 = arith.constant 32 : i32
          %164 = arith.addi %54, %c32_i32_63 : i32
          %c1_i32_64 = arith.constant 1 : i32
          %165 = arith.addi %164, %c1_i32_64 : i32
          %166 = arith.index_cast %165 : i32 to index
          %167 = memref.load %arg1[%166] : memref<768xf32, #tpu.memory_space<smem>>
          %168 = vector.broadcast %167 : f32 to vector<1x128xf32>
          %169 = arith.mulf %168, %148 : vector<1x128xf32>
          %170 = arith.addf %105, %169 : vector<1x128xf32>
          %c40_i32_65 = arith.constant 40 : i32
          %171 = arith.addi %54, %c40_i32_65 : i32
          %c1_i32_66 = arith.constant 1 : i32
          %172 = arith.addi %171, %c1_i32_66 : i32
          %173 = arith.index_cast %172 : i32 to index
          %174 = memref.load %arg1[%173] : memref<768xf32, #tpu.memory_space<smem>>
          %175 = vector.broadcast %174 : f32 to vector<1x128xf32>
          %176 = arith.mulf %175, %148 : vector<1x128xf32>
          %177 = arith.addf %112, %176 : vector<1x128xf32>
          %c48_i32_67 = arith.constant 48 : i32
          %178 = arith.addi %54, %c48_i32_67 : i32
          %c1_i32_68 = arith.constant 1 : i32
          %179 = arith.addi %178, %c1_i32_68 : i32
          %180 = arith.index_cast %179 : i32 to index
          %181 = memref.load %arg1[%180] : memref<768xf32, #tpu.memory_space<smem>>
          %182 = vector.broadcast %181 : f32 to vector<1x128xf32>
          %183 = arith.mulf %182, %148 : vector<1x128xf32>
          %184 = arith.addf %119, %183 : vector<1x128xf32>
          %c56_i32_69 = arith.constant 56 : i32
          %185 = arith.addi %54, %c56_i32_69 : i32
          %c1_i32_70 = arith.constant 1 : i32
          %186 = arith.addi %185, %c1_i32_70 : i32
          %187 = arith.index_cast %186 : i32 to index
          %188 = memref.load %arg1[%187] : memref<768xf32, #tpu.memory_space<smem>>
          %189 = vector.broadcast %188 : f32 to vector<1x128xf32>
          %190 = arith.mulf %189, %148 : vector<1x128xf32>
          %191 = arith.addf %126, %190 : vector<1x128xf32>
          %192 = arith.mulf %156, %156 : vector<1x128xf32>
          %c8_i32_71 = arith.constant 8 : i32
          %193 = tpu.dynamic_rotate %192 by %c8_i32_71 dim 1 : vector<1x128xf32>, i32 -> vector<1x128xf32>
          %194 = arith.addf %192, %193 : vector<1x128xf32>
          %c16_i32_72 = arith.constant 16 : i32
          %195 = tpu.dynamic_rotate %194 by %c16_i32_72 dim 1 : vector<1x128xf32>, i32 -> vector<1x128xf32>
          %196 = arith.addf %194, %195 : vector<1x128xf32>
          %c32_i32_73 = arith.constant 32 : i32
          %197 = tpu.dynamic_rotate %196 by %c32_i32_73 dim 1 : vector<1x128xf32>, i32 -> vector<1x128xf32>
          %198 = arith.addf %196, %197 : vector<1x128xf32>
          %c64_i32_74 = arith.constant 64 : i32
          %199 = tpu.dynamic_rotate %198 by %c64_i32_74 dim 1 : vector<1x128xf32>, i32 -> vector<1x128xf32>
          %200 = arith.addf %198, %199 : vector<1x128xf32>
          %cst_75 = arith.constant 1.000000e-30 : f32
          %201 = vector.broadcast %cst_75 : f32 to vector<1x128xf32>
          %202 = arith.maximumf %200, %201 : vector<1x128xf32>
          %203 = math.rsqrt %202 : vector<1x128xf32>
          %204 = vector.extract_strided_slice %42 {offsets = [2, 0], sizes = [1, 128], strides = [1, 1]} : vector<8x128xf32> to vector<1x128xf32>
          %cst_76 = arith.constant 9.99999968E-21 : f32
          %205 = vector.broadcast %cst_76 : f32 to vector<1x128xf32>
          %206 = arith.cmpf ogt, %200, %205 : vector<1x128xf32>
          %cst_77 = arith.constant 0.000000e+00 : f32
          %207 = vector.broadcast %cst_77 : f32 to vector<1x128xf32>
          %208 = arith.subf %207, %156 : vector<1x128xf32>
          %209 = arith.mulf %208, %203 : vector<1x128xf32>
          %210 = arith.select %206, %209, %204 : vector<1x128xi1>, vector<1x128xf32>
          %211 = vector.extract_strided_slice %45 {offsets = [2, 0], sizes = [1, 128], strides = [1, 1]} : vector<8x128xf32> to vector<1x128xf32>
          %212 = arith.subf %210, %204 : vector<1x128xf32>
          %213 = arith.mulf %211, %212 : vector<1x128xf32>
          %c2 = arith.constant 2 : index
          %c0_78 = arith.constant 0 : index
          %214 = vector.load %arg9[%c2, %c0_78] : memref<8x128xf32, #tpu.memory_space<vmem>>, vector<1x128xf32>
          tpu.vector_store %arg9[%c2, %c0_78], %213 {strides = array<i32>} : memref<8x128xf32, #tpu.memory_space<vmem>>, vector<1x128xf32>,
          %c24_i32_79 = arith.constant 24 : i32
          %215 = arith.addi %54, %c24_i32_79 : i32
          %c2_i32 = arith.constant 2 : i32
          %216 = arith.addi %215, %c2_i32 : i32
          %217 = arith.index_cast %216 : i32 to index
          %218 = memref.load %arg1[%217] : memref<768xf32, #tpu.memory_space<smem>>
          %219 = vector.broadcast %218 : f32 to vector<1x128xf32>
          %220 = arith.mulf %219, %213 : vector<1x128xf32>
          %221 = arith.addf %163, %220 : vector<1x128xf32>
          %c32_i32_80 = arith.constant 32 : i32
          %222 = arith.addi %54, %c32_i32_80 : i32
          %c2_i32_81 = arith.constant 2 : i32
          %223 = arith.addi %222, %c2_i32_81 : i32
          %224 = arith.index_cast %223 : i32 to index
          %225 = memref.load %arg1[%224] : memref<768xf32, #tpu.memory_space<smem>>
          %226 = vector.broadcast %225 : f32 to vector<1x128xf32>
          %227 = arith.mulf %226, %213 : vector<1x128xf32>
          %228 = arith.addf %170, %227 : vector<1x128xf32>
          %c40_i32_82 = arith.constant 40 : i32
          %229 = arith.addi %54, %c40_i32_82 : i32
          %c2_i32_83 = arith.constant 2 : i32
          %230 = arith.addi %229, %c2_i32_83 : i32
          %231 = arith.index_cast %230 : i32 to index
          %232 = memref.load %arg1[%231] : memref<768xf32, #tpu.memory_space<smem>>
          %233 = vector.broadcast %232 : f32 to vector<1x128xf32>
          %234 = arith.mulf %233, %213 : vector<1x128xf32>
          %235 = arith.addf %177, %234 : vector<1x128xf32>
          %c48_i32_84 = arith.constant 48 : i32
          %236 = arith.addi %54, %c48_i32_84 : i32
          %c2_i32_85 = arith.constant 2 : i32
          %237 = arith.addi %236, %c2_i32_85 : i32
          %238 = arith.index_cast %237 : i32 to index
          %239 = memref.load %arg1[%238] : memref<768xf32, #tpu.memory_space<smem>>
          %240 = vector.broadcast %239 : f32 to vector<1x128xf32>
          %241 = arith.mulf %240, %213 : vector<1x128xf32>
          %242 = arith.addf %184, %241 : vector<1x128xf32>
          %c56_i32_86 = arith.constant 56 : i32
          %243 = arith.addi %54, %c56_i32_86 : i32
          %c2_i32_87 = arith.constant 2 : i32
          %244 = arith.addi %243, %c2_i32_87 : i32
          %245 = arith.index_cast %244 : i32 to index
          %246 = memref.load %arg1[%245] : memref<768xf32, #tpu.memory_space<smem>>
          %247 = vector.broadcast %246 : f32 to vector<1x128xf32>
          %248 = arith.mulf %247, %213 : vector<1x128xf32>
          %249 = arith.addf %191, %248 : vector<1x128xf32>
          %250 = arith.mulf %221, %221 : vector<1x128xf32>
          %c8_i32_88 = arith.constant 8 : i32
          %251 = tpu.dynamic_rotate %250 by %c8_i32_88 dim 1 : vector<1x128xf32>, i32 -> vector<1x128xf32>
          %252 = arith.addf %250, %251 : vector<1x128xf32>
          %c16_i32_89 = arith.constant 16 : i32
          %253 = tpu.dynamic_rotate %252 by %c16_i32_89 dim 1 : vector<1x128xf32>, i32 -> vector<1x128xf32>
          %254 = arith.addf %252, %253 : vector<1x128xf32>
          %c32_i32_90 = arith.constant 32 : i32
          %255 = tpu.dynamic_rotate %254 by %c32_i32_90 dim 1 : vector<1x128xf32>, i32 -> vector<1x128xf32>
          %256 = arith.addf %254, %255 : vector<1x128xf32>
          %c64_i32_91 = arith.constant 64 : i32
          %257 = tpu.dynamic_rotate %256 by %c64_i32_91 dim 1 : vector<1x128xf32>, i32 -> vector<1x128xf32>
          %258 = arith.addf %256, %257 : vector<1x128xf32>
          %cst_92 = arith.constant 1.000000e-30 : f32
          %259 = vector.broadcast %cst_92 : f32 to vector<1x128xf32>
          %260 = arith.maximumf %258, %259 : vector<1x128xf32>
          %261 = math.rsqrt %260 : vector<1x128xf32>
          %262 = vector.extract_strided_slice %42 {offsets = [3, 0], sizes = [1, 128], strides = [1, 1]} : vector<8x128xf32> to vector<1x128xf32>
          %cst_93 = arith.constant 9.99999968E-21 : f32
          %263 = vector.broadcast %cst_93 : f32 to vector<1x128xf32>
          %264 = arith.cmpf ogt, %258, %263 : vector<1x128xf32>
          %cst_94 = arith.constant 0.000000e+00 : f32
          %265 = vector.broadcast %cst_94 : f32 to vector<1x128xf32>
          %266 = arith.subf %265, %221 : vector<1x128xf32>
          %267 = arith.mulf %266, %261 : vector<1x128xf32>
          %268 = arith.select %264, %267, %262 : vector<1x128xi1>, vector<1x128xf32>
          %269 = vector.extract_strided_slice %45 {offsets = [3, 0], sizes = [1, 128], strides = [1, 1]} : vector<8x128xf32> to vector<1x128xf32>
          %270 = arith.subf %268, %262 : vector<1x128xf32>
          %271 = arith.mulf %269, %270 : vector<1x128xf32>
          %c3 = arith.constant 3 : index
          %c0_95 = arith.constant 0 : index
          %272 = vector.load %arg9[%c3, %c0_95] : memref<8x128xf32, #tpu.memory_space<vmem>>, vector<1x128xf32>
          tpu.vector_store %arg9[%c3, %c0_95], %271 {strides = array<i32>} : memref<8x128xf32, #tpu.memory_space<vmem>>, vector<1x128xf32>,
          %c32_i32_96 = arith.constant 32 : i32
          %273 = arith.addi %54, %c32_i32_96 : i32
          %c3_i32 = arith.constant 3 : i32
          %274 = arith.addi %273, %c3_i32 : i32
          %275 = arith.index_cast %274 : i32 to index
          %276 = memref.load %arg1[%275] : memref<768xf32, #tpu.memory_space<smem>>
          %277 = vector.broadcast %276 : f32 to vector<1x128xf32>
          %278 = arith.mulf %277, %271 : vector<1x128xf32>
          %279 = arith.addf %228, %278 : vector<1x128xf32>
          %c40_i32_97 = arith.constant 40 : i32
          %280 = arith.addi %54, %c40_i32_97 : i32
          %c3_i32_98 = arith.constant 3 : i32
          %281 = arith.addi %280, %c3_i32_98 : i32
          %282 = arith.index_cast %281 : i32 to index
          %283 = memref.load %arg1[%282] : memref<768xf32, #tpu.memory_space<smem>>
          %284 = vector.broadcast %283 : f32 to vector<1x128xf32>
          %285 = arith.mulf %284, %271 : vector<1x128xf32>
          %286 = arith.addf %235, %285 : vector<1x128xf32>
          %c48_i32_99 = arith.constant 48 : i32
          %287 = arith.addi %54, %c48_i32_99 : i32
          %c3_i32_100 = arith.constant 3 : i32
          %288 = arith.addi %287, %c3_i32_100 : i32
          %289 = arith.index_cast %288 : i32 to index
          %290 = memref.load %arg1[%289] : memref<768xf32, #tpu.memory_space<smem>>
          %291 = vector.broadcast %290 : f32 to vector<1x128xf32>
          %292 = arith.mulf %291, %271 : vector<1x128xf32>
          %293 = arith.addf %242, %292 : vector<1x128xf32>
          %c56_i32_101 = arith.constant 56 : i32
          %294 = arith.addi %54, %c56_i32_101 : i32
          %c3_i32_102 = arith.constant 3 : i32
          %295 = arith.addi %294, %c3_i32_102 : i32
          %296 = arith.index_cast %295 : i32 to index
          %297 = memref.load %arg1[%296] : memref<768xf32, #tpu.memory_space<smem>>
          %298 = vector.broadcast %297 : f32 to vector<1x128xf32>
          %299 = arith.mulf %298, %271 : vector<1x128xf32>
          %300 = arith.addf %249, %299 : vector<1x128xf32>
          %301 = arith.mulf %279, %279 : vector<1x128xf32>
          %c8_i32_103 = arith.constant 8 : i32
          %302 = tpu.dynamic_rotate %301 by %c8_i32_103 dim 1 : vector<1x128xf32>, i32 -> vector<1x128xf32>
          %303 = arith.addf %301, %302 : vector<1x128xf32>
          %c16_i32_104 = arith.constant 16 : i32
          %304 = tpu.dynamic_rotate %303 by %c16_i32_104 dim 1 : vector<1x128xf32>, i32 -> vector<1x128xf32>
          %305 = arith.addf %303, %304 : vector<1x128xf32>
          %c32_i32_105 = arith.constant 32 : i32
          %306 = tpu.dynamic_rotate %305 by %c32_i32_105 dim 1 : vector<1x128xf32>, i32 -> vector<1x128xf32>
          %307 = arith.addf %305, %306 : vector<1x128xf32>
          %c64_i32_106 = arith.constant 64 : i32
          %308 = tpu.dynamic_rotate %307 by %c64_i32_106 dim 1 : vector<1x128xf32>, i32 -> vector<1x128xf32>
          %309 = arith.addf %307, %308 : vector<1x128xf32>
          %cst_107 = arith.constant 1.000000e-30 : f32
          %310 = vector.broadcast %cst_107 : f32 to vector<1x128xf32>
          %311 = arith.maximumf %309, %310 : vector<1x128xf32>
          %312 = math.rsqrt %311 : vector<1x128xf32>
          %313 = vector.extract_strided_slice %42 {offsets = [4, 0], sizes = [1, 128], strides = [1, 1]} : vector<8x128xf32> to vector<1x128xf32>
          %cst_108 = arith.constant 9.99999968E-21 : f32
          %314 = vector.broadcast %cst_108 : f32 to vector<1x128xf32>
          %315 = arith.cmpf ogt, %309, %314 : vector<1x128xf32>
          %cst_109 = arith.constant 0.000000e+00 : f32
          %316 = vector.broadcast %cst_109 : f32 to vector<1x128xf32>
          %317 = arith.subf %316, %279 : vector<1x128xf32>
          %318 = arith.mulf %317, %312 : vector<1x128xf32>
          %319 = arith.select %315, %318, %313 : vector<1x128xi1>, vector<1x128xf32>
          %320 = vector.extract_strided_slice %45 {offsets = [4, 0], sizes = [1, 128], strides = [1, 1]} : vector<8x128xf32> to vector<1x128xf32>
          %321 = arith.subf %319, %313 : vector<1x128xf32>
          %322 = arith.mulf %320, %321 : vector<1x128xf32>
          %c4 = arith.constant 4 : index
          %c0_110 = arith.constant 0 : index
          %323 = vector.load %arg9[%c4, %c0_110] : memref<8x128xf32, #tpu.memory_space<vmem>>, vector<1x128xf32>
          tpu.vector_store %arg9[%c4, %c0_110], %322 {strides = array<i32>} : memref<8x128xf32, #tpu.memory_space<vmem>>, vector<1x128xf32>,
          %c40_i32_111 = arith.constant 40 : i32
          %324 = arith.addi %54, %c40_i32_111 : i32
          %c4_i32 = arith.constant 4 : i32
          %325 = arith.addi %324, %c4_i32 : i32
          %326 = arith.index_cast %325 : i32 to index
          %327 = memref.load %arg1[%326] : memref<768xf32, #tpu.memory_space<smem>>
          %328 = vector.broadcast %327 : f32 to vector<1x128xf32>
          %329 = arith.mulf %328, %322 : vector<1x128xf32>
          %330 = arith.addf %286, %329 : vector<1x128xf32>
          %c48_i32_112 = arith.constant 48 : i32
          %331 = arith.addi %54, %c48_i32_112 : i32
          %c4_i32_113 = arith.constant 4 : i32
          %332 = arith.addi %331, %c4_i32_113 : i32
          %333 = arith.index_cast %332 : i32 to index
          %334 = memref.load %arg1[%333] : memref<768xf32, #tpu.memory_space<smem>>
          %335 = vector.broadcast %334 : f32 to vector<1x128xf32>
          %336 = arith.mulf %335, %322 : vector<1x128xf32>
          %337 = arith.addf %293, %336 : vector<1x128xf32>
          %c56_i32_114 = arith.constant 56 : i32
          %338 = arith.addi %54, %c56_i32_114 : i32
          %c4_i32_115 = arith.constant 4 : i32
          %339 = arith.addi %338, %c4_i32_115 : i32
          %340 = arith.index_cast %339 : i32 to index
          %341 = memref.load %arg1[%340] : memref<768xf32, #tpu.memory_space<smem>>
          %342 = vector.broadcast %341 : f32 to vector<1x128xf32>
          %343 = arith.mulf %342, %322 : vector<1x128xf32>
          %344 = arith.addf %300, %343 : vector<1x128xf32>
          %345 = arith.mulf %330, %330 : vector<1x128xf32>
          %c8_i32_116 = arith.constant 8 : i32
          %346 = tpu.dynamic_rotate %345 by %c8_i32_116 dim 1 : vector<1x128xf32>, i32 -> vector<1x128xf32>
          %347 = arith.addf %345, %346 : vector<1x128xf32>
          %c16_i32_117 = arith.constant 16 : i32
          %348 = tpu.dynamic_rotate %347 by %c16_i32_117 dim 1 : vector<1x128xf32>, i32 -> vector<1x128xf32>
          %349 = arith.addf %347, %348 : vector<1x128xf32>
          %c32_i32_118 = arith.constant 32 : i32
          %350 = tpu.dynamic_rotate %349 by %c32_i32_118 dim 1 : vector<1x128xf32>, i32 -> vector<1x128xf32>
          %351 = arith.addf %349, %350 : vector<1x128xf32>
          %c64_i32_119 = arith.constant 64 : i32
          %352 = tpu.dynamic_rotate %351 by %c64_i32_119 dim 1 : vector<1x128xf32>, i32 -> vector<1x128xf32>
          %353 = arith.addf %351, %352 : vector<1x128xf32>
          %cst_120 = arith.constant 1.000000e-30 : f32
          %354 = vector.broadcast %cst_120 : f32 to vector<1x128xf32>
          %355 = arith.maximumf %353, %354 : vector<1x128xf32>
          %356 = math.rsqrt %355 : vector<1x128xf32>
          %357 = vector.extract_strided_slice %42 {offsets = [5, 0], sizes = [1, 128], strides = [1, 1]} : vector<8x128xf32> to vector<1x128xf32>
          %cst_121 = arith.constant 9.99999968E-21 : f32
          %358 = vector.broadcast %cst_121 : f32 to vector<1x128xf32>
          %359 = arith.cmpf ogt, %353, %358 : vector<1x128xf32>
          %cst_122 = arith.constant 0.000000e+00 : f32
          %360 = vector.broadcast %cst_122 : f32 to vector<1x128xf32>
          %361 = arith.subf %360, %330 : vector<1x128xf32>
          %362 = arith.mulf %361, %356 : vector<1x128xf32>
          %363 = arith.select %359, %362, %357 : vector<1x128xi1>, vector<1x128xf32>
          %364 = vector.extract_strided_slice %45 {offsets = [5, 0], sizes = [1, 128], strides = [1, 1]} : vector<8x128xf32> to vector<1x128xf32>
          %365 = arith.subf %363, %357 : vector<1x128xf32>
          %366 = arith.mulf %364, %365 : vector<1x128xf32>
          %c5 = arith.constant 5 : index
          %c0_123 = arith.constant 0 : index
          %367 = vector.load %arg9[%c5, %c0_123] : memref<8x128xf32, #tpu.memory_space<vmem>>, vector<1x128xf32>
          tpu.vector_store %arg9[%c5, %c0_123], %366 {strides = array<i32>} : memref<8x128xf32, #tpu.memory_space<vmem>>, vector<1x128xf32>,
          %c48_i32_124 = arith.constant 48 : i32
          %368 = arith.addi %54, %c48_i32_124 : i32
          %c5_i32 = arith.constant 5 : i32
          %369 = arith.addi %368, %c5_i32 : i32
          %370 = arith.index_cast %369 : i32 to index
          %371 = memref.load %arg1[%370] : memref<768xf32, #tpu.memory_space<smem>>
          %372 = vector.broadcast %371 : f32 to vector<1x128xf32>
          %373 = arith.mulf %372, %366 : vector<1x128xf32>
          %374 = arith.addf %337, %373 : vector<1x128xf32>
          %c56_i32_125 = arith.constant 56 : i32
          %375 = arith.addi %54, %c56_i32_125 : i32
          %c5_i32_126 = arith.constant 5 : i32
          %376 = arith.addi %375, %c5_i32_126 : i32
          %377 = arith.index_cast %376 : i32 to index
          %378 = memref.load %arg1[%377] : memref<768xf32, #tpu.memory_space<smem>>
          %379 = vector.broadcast %378 : f32 to vector<1x128xf32>
          %380 = arith.mulf %379, %366 : vector<1x128xf32>
          %381 = arith.addf %344, %380 : vector<1x128xf32>
          %382 = arith.mulf %374, %374 : vector<1x128xf32>
          %c8_i32_127 = arith.constant 8 : i32
          %383 = tpu.dynamic_rotate %382 by %c8_i32_127 dim 1 : vector<1x128xf32>, i32 -> vector<1x128xf32>
          %384 = arith.addf %382, %383 : vector<1x128xf32>
          %c16_i32_128 = arith.constant 16 : i32
          %385 = tpu.dynamic_rotate %384 by %c16_i32_128 dim 1 : vector<1x128xf32>, i32 -> vector<1x128xf32>
          %386 = arith.addf %384, %385 : vector<1x128xf32>
          %c32_i32_129 = arith.constant 32 : i32
          %387 = tpu.dynamic_rotate %386 by %c32_i32_129 dim 1 : vector<1x128xf32>, i32 -> vector<1x128xf32>
          %388 = arith.addf %386, %387 : vector<1x128xf32>
          %c64_i32_130 = arith.constant 64 : i32
          %389 = tpu.dynamic_rotate %388 by %c64_i32_130 dim 1 : vector<1x128xf32>, i32 -> vector<1x128xf32>
          %390 = arith.addf %388, %389 : vector<1x128xf32>
          %cst_131 = arith.constant 1.000000e-30 : f32
          %391 = vector.broadcast %cst_131 : f32 to vector<1x128xf32>
          %392 = arith.maximumf %390, %391 : vector<1x128xf32>
          %393 = math.rsqrt %392 : vector<1x128xf32>
          %394 = vector.extract_strided_slice %42 {offsets = [6, 0], sizes = [1, 128], strides = [1, 1]} : vector<8x128xf32> to vector<1x128xf32>
          %cst_132 = arith.constant 9.99999968E-21 : f32
          %395 = vector.broadcast %cst_132 : f32 to vector<1x128xf32>
          %396 = arith.cmpf ogt, %390, %395 : vector<1x128xf32>
          %cst_133 = arith.constant 0.000000e+00 : f32
          %397 = vector.broadcast %cst_133 : f32 to vector<1x128xf32>
          %398 = arith.subf %397, %374 : vector<1x128xf32>
          %399 = arith.mulf %398, %393 : vector<1x128xf32>
          %400 = arith.select %396, %399, %394 : vector<1x128xi1>, vector<1x128xf32>
          %401 = vector.extract_strided_slice %45 {offsets = [6, 0], sizes = [1, 128], strides = [1, 1]} : vector<8x128xf32> to vector<1x128xf32>
          %402 = arith.subf %400, %394 : vector<1x128xf32>
          %403 = arith.mulf %401, %402 : vector<1x128xf32>
          %c6 = arith.constant 6 : index
          %c0_134 = arith.constant 0 : index
          %404 = vector.load %arg9[%c6, %c0_134] : memref<8x128xf32, #tpu.memory_space<vmem>>, vector<1x128xf32>
          tpu.vector_store %arg9[%c6, %c0_134], %403 {strides = array<i32>} : memref<8x128xf32, #tpu.memory_space<vmem>>, vector<1x128xf32>,
          %c56_i32_135 = arith.constant 56 : i32
          %405 = arith.addi %54, %c56_i32_135 : i32
          %c6_i32 = arith.constant 6 : i32
          %406 = arith.addi %405, %c6_i32 : i32
          %407 = arith.index_cast %406 : i32 to index
          %408 = memref.load %arg1[%407] : memref<768xf32, #tpu.memory_space<smem>>
          %409 = vector.broadcast %408 : f32 to vector<1x128xf32>
          %410 = arith.mulf %409, %403 : vector<1x128xf32>
          %411 = arith.addf %381, %410 : vector<1x128xf32>
          %412 = arith.mulf %411, %411 : vector<1x128xf32>
          %c8_i32_136 = arith.constant 8 : i32
          %413 = tpu.dynamic_rotate %412 by %c8_i32_136 dim 1 : vector<1x128xf32>, i32 -> vector<1x128xf32>
          %414 = arith.addf %412, %413 : vector<1x128xf32>
          %c16_i32_137 = arith.constant 16 : i32
          %415 = tpu.dynamic_rotate %414 by %c16_i32_137 dim 1 : vector<1x128xf32>, i32 -> vector<1x128xf32>
          %416 = arith.addf %414, %415 : vector<1x128xf32>
          %c32_i32_138 = arith.constant 32 : i32
          %417 = tpu.dynamic_rotate %416 by %c32_i32_138 dim 1 : vector<1x128xf32>, i32 -> vector<1x128xf32>
          %418 = arith.addf %416, %417 : vector<1x128xf32>
          %c64_i32_139 = arith.constant 64 : i32
          %419 = tpu.dynamic_rotate %418 by %c64_i32_139 dim 1 : vector<1x128xf32>, i32 -> vector<1x128xf32>
          %420 = arith.addf %418, %419 : vector<1x128xf32>
          %cst_140 = arith.constant 1.000000e-30 : f32
          %421 = vector.broadcast %cst_140 : f32 to vector<1x128xf32>
          %422 = arith.maximumf %420, %421 : vector<1x128xf32>
          %423 = math.rsqrt %422 : vector<1x128xf32>
          %424 = vector.extract_strided_slice %42 {offsets = [7, 0], sizes = [1, 128], strides = [1, 1]} : vector<8x128xf32> to vector<1x128xf32>
          %cst_141 = arith.constant 9.99999968E-21 : f32
          %425 = vector.broadcast %cst_141 : f32 to vector<1x128xf32>
          %426 = arith.cmpf ogt, %420, %425 : vector<1x128xf32>
          %cst_142 = arith.constant 0.000000e+00 : f32
          %427 = vector.broadcast %cst_142 : f32 to vector<1x128xf32>
          %428 = arith.subf %427, %411 : vector<1x128xf32>
          %429 = arith.mulf %428, %423 : vector<1x128xf32>
          %430 = arith.select %426, %429, %424 : vector<1x128xi1>, vector<1x128xf32>
          %431 = vector.extract_strided_slice %45 {offsets = [7, 0], sizes = [1, 128], strides = [1, 1]} : vector<8x128xf32> to vector<1x128xf32>
          %432 = arith.subf %430, %424 : vector<1x128xf32>
          %433 = arith.mulf %431, %432 : vector<1x128xf32>
          %c7 = arith.constant 7 : index
          %c0_143 = arith.constant 0 : index
          %434 = vector.load %arg9[%c7, %c0_143] : memref<8x128xf32, #tpu.memory_space<vmem>>, vector<1x128xf32>
          tpu.vector_store %arg9[%c7, %c0_143], %433 {strides = array<i32>} : memref<8x128xf32, #tpu.memory_space<vmem>>, vector<1x128xf32>,
          %c0_144 = arith.constant 0 : index
          %c0_145 = arith.constant 0 : index
          %435 = vector.load %arg9[%c0_144, %c0_145] : memref<8x128xf32, #tpu.memory_space<vmem>>, vector<8x128xf32>
          %436 = arith.addf %42, %435 : vector<8x128xf32>
          %437 = arith.index_cast %38 : i32 to index
          %c0_146 = arith.constant 0 : index
          %438 = vector.load %arg7[%437, %c0_146] : memref<96x128xf32, #tpu.memory_space<vmem>>, vector<8x128xf32>
          tpu.vector_store %arg7[%437, %c0_146], %436 {strides = array<i32>} : memref<96x128xf32, #tpu.memory_space<vmem>>, vector<8x128xf32>,
          %c0_147 = arith.constant 0 : index
          %c0_148 = arith.constant 0 : index
          %439 = vector.load %arg8[%c0_147, %c0_148] : memref<96x128xf32, #tpu.memory_space<vmem>>, vector<96x128xf32>
          %440 = arith.index_cast %arg12 : i32 to index
          %c0_149 = arith.constant 0 : index
          %c0_150 = arith.constant 0 : index
          %441 = vector.load %arg3[%440, %c0_149, %c0_150] : memref<12x96x8xf32, #tpu.memory_space<vmem>>, vector<1x96x8xf32>
          %442 = vector.shape_cast %441 : vector<1x96x8xf32> to vector<96x8xf32>
          %cst_151 = arith.constant dense<0.000000e+00> : vector<96x128xf32>
          %443 = tpu.matmul %442, %435, %cst_151 {dimension_numbers = #tpu.dot_dimension_numbers<[1], [0], [0], [1], [0, 0, 1, 1], [], []>} : vector<96x8xf32>, vector<8x128xf32>, vector<96x128xf32> -> vector<96x128xf32>
          %444 = arith.addf %439, %443 : vector<96x128xf32>
          %c0_152 = arith.constant 0 : index
          %c0_153 = arith.constant 0 : index
          %445 = vector.load %arg8[%c0_152, %c0_153] : memref<96x128xf32, #tpu.memory_space<vmem>>, vector<96x128xf32>
          tpu.vector_store %arg8[%c0_152, %c0_153], %444 {strides = array<i32>} : memref<96x128xf32, #tpu.memory_space<vmem>>, vector<96x128xf32>,
          %446 = arith.mulf %435, %435 : vector<8x128xf32>
          %447 = arith.addf %arg13, %446 : vector<8x128xf32>
          scf.yield %447 : vector<8x128xf32>
        }
        %c12_i32_23 = arith.constant 12 : i32
        %32 = vector.shape_cast %31 : vector<8x128xf32> to vector<1x8x128xf32>
        %cst_24 = arith.constant dense<0.000000e+00> : vector<1xf32>
        %33 = vector.multi_reduction <add>, %32, %cst_24 [1, 2] : vector<1x8x128xf32> to vector<1xf32>
        %34 = vector.shape_cast %33 : vector<1xf32> to vector<1x1x1xf32>
        %35 = vector.extract %34[0, 0, 0] : f32 from vector<1x1x1xf32>
        %c0_25 = arith.constant 0 : index
        %36 = memref.load %arg10[%c0_25] : memref<1xf32, #tpu.memory_space<smem>>
        memref.store %35, %arg10[%c0_25] : memref<1xf32, #tpu.memory_space<smem>>
      } else {
      }
    }
    %c0_5 = arith.constant 0 : index
    %c0_6 = arith.constant 0 : index
    %5 = vector.load %arg7[%c0_5, %c0_6] : memref<96x128xf32, #tpu.memory_space<vmem>>, vector<96x128xf32>
    %6 = vector.extract_strided_slice %5 {offsets = [0, 0], sizes = [1, 128], strides = [1, 1]} : vector<96x128xf32> to vector<1x128xf32>
    %7 = vector.broadcast %6 : vector<1x128xf32> to vector<96x128xf32>
    %8 = arith.mulf %5, %7 : vector<96x128xf32>
    %c8_i32 = arith.constant 8 : i32
    %9 = tpu.dynamic_rotate %8 by %c8_i32 dim 1 : vector<96x128xf32>, i32 -> vector<96x128xf32>
    %10 = arith.addf %8, %9 : vector<96x128xf32>
    %c16_i32 = arith.constant 16 : i32
    %11 = tpu.dynamic_rotate %10 by %c16_i32 dim 1 : vector<96x128xf32>, i32 -> vector<96x128xf32>
    %12 = arith.addf %10, %11 : vector<96x128xf32>
    %c32_i32 = arith.constant 32 : i32
    %13 = tpu.dynamic_rotate %12 by %c32_i32 dim 1 : vector<96x128xf32>, i32 -> vector<96x128xf32>
    %14 = arith.addf %12, %13 : vector<96x128xf32>
    %c64_i32 = arith.constant 64 : i32
    %15 = tpu.dynamic_rotate %14 by %c64_i32 dim 1 : vector<96x128xf32>, i32 -> vector<96x128xf32>
    %16 = arith.addf %14, %15 : vector<96x128xf32>
    %17 = vector.extract_strided_slice %16 {offsets = [0, 0], sizes = [96, 8], strides = [1, 1]} : vector<96x128xf32> to vector<96x8xf32>
    %c0_7 = arith.constant 0 : index
    %c0_8 = arith.constant 0 : index
    %c0_9 = arith.constant 0 : index
    %18 = vector.load %arg6[%c0_7, %c0_8, %c0_9] : memref<1x96x8xf32, #tpu.memory_space<vmem>>, vector<1x96x8xf32>
    %19 = vector.shape_cast %18 : vector<1x96x8xf32> to vector<96x8xf32>
    %20 = vector.shape_cast %17 : vector<96x8xf32> to vector<1x96x8xf32>
    tpu.vector_store %arg6[%c0_7, %c0_8, %c0_9], %20 {strides = array<i32>} : memref<1x96x8xf32, #tpu.memory_space<vmem>>, vector<1x96x8xf32>,
    return
  }
  func.func @transform_0(%arg0: i32, %arg1: memref<768xf32, #tpu.memory_space<smem>>) -> (i32, i32) {
    %c0_i32 = arith.constant 0 : i32
    %c0_i32_0 = arith.constant 0 : i32
    %c0_i32_1 = arith.constant 0 : i32
    return %c0_i32, %c0_i32_0 : i32, i32
  }
  func.func @transform_1(%arg0: i32, %arg1: memref<768xf32, #tpu.memory_space<smem>>) -> (i32, i32, i32) {
    %c0_i32 = arith.constant 0 : i32
    %c0_i32_0 = arith.constant 0 : i32
    %c0_i32_1 = arith.constant 0 : i32
    %c0_i32_2 = arith.constant 0 : i32
    return %c0_i32, %c0_i32_0, %c0_i32_1 : i32, i32, i32
  }
  func.func @transform_2(%arg0: i32, %arg1: memref<768xf32, #tpu.memory_space<smem>>) -> (i32, i32, i32) {
    %c0_i32 = arith.constant 0 : i32
    %c0_i32_0 = arith.constant 0 : i32
    %c0_i32_1 = arith.constant 0 : i32
    return %arg0, %c0_i32, %c0_i32_0 : i32, i32, i32
  }
  func.func @transform_3(%arg0: i32, %arg1: memref<768xf32, #tpu.memory_space<smem>>) -> (i32, i32, i32) {
    %c0_i32 = arith.constant 0 : i32
    %c0_i32_0 = arith.constant 0 : i32
    %c0_i32_1 = arith.constant 0 : i32
    return %arg0, %c0_i32, %c0_i32_0 : i32, i32, i32
  }
  func.func @transform_4(%arg0: i32, %arg1: memref<768xf32, #tpu.memory_space<smem>>) -> (i32, i32, i32) {
    %c0_i32 = arith.constant 0 : i32
    %c0_i32_0 = arith.constant 0 : i32
    %c0_i32_1 = arith.constant 0 : i32
    return %arg0, %c0_i32, %c0_i32_0 : i32, i32, i32
  }
}

</mosaic_0001>

<llo_original>
// kernel: tpu_custom_call.1
$region0: #{tpu_custom_call.1}
  #allocation0 [shape = 'u32[]', space=smem, size = 0x4, offset = 0x4, fixed_abs, tag = 'smem constant byte address 0x4 - core index']
  #allocation1 [shape = 'u32[72,128]{1,0:T(1,128)}', space=vmem, size = 0x9000, scoped, tag = 'internal scratch']
  #allocation2 [shape = 'f32[96,128]{1,0:T(8,128)}', space=vmem, size = 0xc000, scoped, tag = 'scratch operand']
  #allocation3 [shape = 'f32[96,128]{1,0:T(8,128)}', space=vmem, size = 0xc000, scoped, tag = 'scratch operand']
  #allocation4 [shape = 'f32[8,128]{1,0:T(8,128)}', space=vmem, size = 0x1000, scoped, tag = 'scratch operand']
  #allocation5 [shape = 'f32[1]{0:T(128)}', space=smem, size = 0x200, scoped, tag = 'scratch operand']
  #allocation6 [shape = 's32[1]{0}', space=sflag, size = 0x4, scoped, tag = 'scoped memory for tpu_custom_call.1']
  #allocation7 [shape = 'u8[3072]{0}', space=smem, size = 0xc00, scoped, tag = 'prefetched SMEM operand 0']
  %s0 = inlined_call_operand.vmem [shape: f32[768], index: 0, kind: input, shape index: {}]
  %s1 = inlined_call_operand.vmem [shape: f32[96,96], index: 1, kind: input, shape index: {}]
  %s2 = inlined_call_operand.vmem [shape: f32[12,96,8], index: 2, kind: input, shape index: {}]
  %s3 = inlined_call_operand.vmem [shape: f32[1,96,128], index: 3, kind: input, shape index: {}]
  %s4 = inlined_call_operand.vmem [shape: f32[1,96,128], index: 4, kind: input, shape index: {}]
  %s5 = inlined_call_operand.vmem [shape: f32[1,96,8], index: 5, kind: output, shape index: {}]
  %s6 = sld [smem:[#allocation0]]
  $region44: #{tpu_custom_call.1} parent=0
    _
  %s8 = ssub.s32 1, %s6
  %s9 = scalar_select 0, %s8, %s6
  %s11 = sshll.u32 %s0, 4
  %s12 = int_to_ptr.vmem [resolvable:$true] %s11
  %14 = dma.vmem_to_smem %s12, 96, [#allocation7], [#allocation6]
  %16 = dma.done [#allocation6], 96
  %17 = sfence
  // Predicated region
  $region2: #{tpu_custom_call.1} parent=0 // pred_check
    _
  $region3: #{tpu_custom_call.1} parent=0 // pred_check_branch
    %19 = sbr.rel (0) target = $region5
  $region4: #{tpu_custom_call.1} parent=0 // pred_region
    _
  $region5: #{tpu_custom_call.1} parent=0 // pred_fallthru
    _
  // Predicated region
  $region6: #{tpu_custom_call.1} parent=0 // pred_check
    _
  $region7: #{tpu_custom_call.1} parent=0 // pred_check_branch
    %21 = sbr.rel (0) target = $region9
  $region8: #{tpu_custom_call.1} parent=0 // pred_region
    _
  $region9: #{tpu_custom_call.1} parent=0 // pred_fallthru
    _
  // Predicated region
  $region10: #{tpu_custom_call.1} parent=0 // pred_check
    _
  $region11: #{tpu_custom_call.1} parent=0 // pred_check_branch
    %23 = sbr.rel (0) target = $region13
  $region12: #{tpu_custom_call.1} parent=0 // pred_region
    _
  $region13: #{tpu_custom_call.1} parent=0 // pred_fallthru
    _
  // Predicated region
  $region14: #{tpu_custom_call.1} parent=0 // pred_check
    _
  $region15: #{tpu_custom_call.1} parent=0 // pred_check_branch
    %25 = sbr.rel (0) target = $region17
  $region16: #{tpu_custom_call.1} parent=0 // pred_region
    _
  $region17: #{tpu_custom_call.1} parent=0 // pred_fallthru
    _
  %v26 = vld [vmem:[%s4] sm:$0xff]
  %v27 = vld [vmem:[%s4 + $0x8] sm:$0xff]
  %v28 = vld [vmem:[%s4 + $0x10] sm:$0xff]
  %v29 = vld [vmem:[%s4 + $0x18] sm:$0xff]
  %v30 = vld [vmem:[%s4 + $0x20] sm:$0xff]
  %v31 = vld [vmem:[%s4 + $0x28] sm:$0xff]
  %v32 = vld [vmem:[%s4 + $0x30] sm:$0xff]
  %v33 = vld [vmem:[%s4 + $0x38] sm:$0xff]
  %v34 = vld [vmem:[%s4 + $0x40] sm:$0xff]
  %v35 = vld [vmem:[%s4 + $0x48] sm:$0xff]
  %v36 = vld [vmem:[%s4 + $0x50] sm:$0xff]
  %v37 = vld [vmem:[%s4 + $0x58] sm:$0xff]
  %38 = vst [vmem:[#allocation2] sm:$0xff] %v26
  %39 = vst [vmem:[#allocation2 + $0x8] sm:$0xff] %v27
  %40 = vst [vmem:[#allocation2 + $0x10] sm:$0xff] %v28
  %41 = vst [vmem:[#allocation2 + $0x18] sm:$0xff] %v29
  %42 = vst [vmem:[#allocation2 + $0x20] sm:$0xff] %v30
  %43 = vst [vmem:[#allocation2 + $0x28] sm:$0xff] %v31
  %44 = vst [vmem:[#allocation2 + $0x30] sm:$0xff] %v32
  %45 = vst [vmem:[#allocation2 + $0x38] sm:$0xff] %v33
  %46 = vst [vmem:[#allocation2 + $0x40] sm:$0xff] %v34
  %47 = vst [vmem:[#allocation2 + $0x48] sm:$0xff] %v35
  %48 = vst [vmem:[#allocation2 + $0x50] sm:$0xff] %v36
  %49 = vst [vmem:[#allocation2 + $0x58] sm:$0xff] %v37
  %s50 = scalar_lea.smem [#allocation5], 0
  %51 = sst [smem:[%s50]] 1e+30
  loop: start=0, step=1, limit=100
  $region18: #{tpu_custom_call.1} parent=0 // loop_pre_header
    _
  $region19: #{tpu_custom_call.1} parent=0 // loop_header
    %s53 = sphi 0, %s57
    %p54 = scmp.ge.s32.totalorder %s53, 100
  $region20: #{tpu_custom_call.1} parent=0 // loop_header_branch
    %56 = sbr.rel (%p54) target = $region24
  $region21: #{tpu_custom_call.1} parent=0 // loop_body
    %s58 = sld [smem:[#allocation5]]
    %p59 = scmp.gt.f32.partialorder %s58, 1e-06
    // Predicated region
    $region25: #{tpu_custom_call.1} parent=21 // pred_check
      %p60 = pneg %p59
    $region26: #{tpu_custom_call.1} parent=21 // pred_check_branch
      %62 = sbr.rel (%p60) target = $region28
    $region27: #{tpu_custom_call.1} parent=21 // pred_region
      %v63 = vld [vmem:[%s1] sm:$0xff]
      %v64 = vld [vmem:[%s1 + $0x8] sm:$0xff]
      %v65 = vld [vmem:[%s1 + $0x10] sm:$0xff]
      %v66 = vld [vmem:[%s1 + $0x18] sm:$0xff]
      %v67 = vld [vmem:[%s1 + $0x20] sm:$0xff]
      %v68 = vld [vmem:[%s1 + $0x28] sm:$0xff]
      %v69 = vld [vmem:[%s1 + $0x30] sm:$0xff]
      %v70 = vld [vmem:[%s1 + $0x38] sm:$0xff]
      %v71 = vld [vmem:[%s1 + $0x40] sm:$0xff]
      %v72 = vld [vmem:[%s1 + $0x48] sm:$0xff]
      %v73 = vld [vmem:[%s1 + $0x50] sm:$0xff]
      %v74 = vld [vmem:[%s1 + $0x58] sm:$0xff]
      %v75 = vld [vmem:[#allocation2] sm:$0xff]
      %v76 = vld [vmem:[#allocation2 + $0x8] sm:$0xff]
      %v77 = vld [vmem:[#allocation2 + $0x10] sm:$0xff]
      %v78 = vld [vmem:[#allocation2 + $0x18] sm:$0xff]
      %v79 = vld [vmem:[#allocation2 + $0x20] sm:$0xff]
      %v80 = vld [vmem:[#allocation2 + $0x28] sm:$0xff]
      %v81 = vld [vmem:[#allocation2 + $0x30] sm:$0xff]
      %v82 = vld [vmem:[#allocation2 + $0x38] sm:$0xff]
      %v83 = vld [vmem:[#allocation2 + $0x40] sm:$0xff]
      %v84 = vld [vmem:[#allocation2 + $0x48] sm:$0xff]
      %v85 = vld [vmem:[#allocation2 + $0x50] sm:$0xff]
      %v86 = vld [vmem:[#allocation2 + $0x58] sm:$0xff]
      %vm87 = vcmask 785408
      %v89 = vsel %vm87, %v63, 0
      %v92 = vsel %vm87, %v64, 0
      %v95 = vsel %vm87, %v65, 0
      %v98 = vsel %vm87, %v66, 0
      %v101 = vsel %vm87, %v67, 0
      %v104 = vsel %vm87, %v68, 0
      %v107 = vsel %vm87, %v69, 0
      %v110 = vsel %vm87, %v70, 0
      %v113 = vsel %vm87, %v71, 0
      %v116 = vsel %vm87, %v72, 0
      %v119 = vsel %vm87, %v73, 0
      %v122 = vsel %vm87, %v74, 0
      %124 = vmatpush.msra.mxu0 0.0
      %125 = vmatpush.msra.mxu0 0.0
      %126 = vmatpush.msra.mxu0 0.0
      %127 = vmatpush.msra.mxu0 0.0
      %128 = vmatpush.msra.mxu0 %v86
      %129 = vmatpush.msra.mxu0 %v85
      %130 = vmatpush.msra.mxu0 %v84
      %131 = vmatpush.msra.mxu0 %v83
      %132 = vmatpush.msra.mxu0 %v82
      %133 = vmatpush.msra.mxu0 %v81
      %134 = vmatpush.msra.mxu0 %v80
      %135 = vmatpush.msra.mxu0 %v79
      %136 = vmatpush.msra.mxu0 %v78
      %137 = vmatpush.msra.mxu0 %v77
      %138 = vmatpush.msra.mxu0 %v76
      %139 = vmatpush.msra.mxu0 %v75
      %140 = vmatmul.f32.gmra.mxu0 %v89
      %v141 = vpop.f32.mrf.mxu0
      %v142 = vadd.f32 0.0, %v141
      %143 = vmatmul.f32.gmra.mxu0 %v92
      %v144 = vpop.f32.mrf.mxu0
      %v145 = vadd.f32 0.0, %v144
      %146 = vmatmul.f32.gmra.mxu0 %v95
      %v147 = vpop.f32.mrf.mxu0
      %v148 = vadd.f32 0.0, %v147
      %149 = vmatmul.f32.gmra.mxu0 %v98
      %v150 = vpop.f32.mrf.mxu0
      %v151 = vadd.f32 0.0, %v150
      %152 = vmatmul.f32.gmra.mxu0 %v101
      %v153 = vpop.f32.mrf.mxu0
      %v154 = vadd.f32 0.0, %v153
      %155 = vmatmul.f32.gmra.mxu0 %v104
      %v156 = vpop.f32.mrf.mxu0
      %v157 = vadd.f32 0.0, %v156
      %158 = vmatmul.f32.gmra.mxu0 %v107
      %v159 = vpop.f32.mrf.mxu0
      %v160 = vadd.f32 0.0, %v159
      %161 = vmatmul.f32.gmra.mxu0 %v110
      %v162 = vpop.f32.mrf.mxu0
      %v163 = vadd.f32 0.0, %v162
      %164 = vmatmul.f32.gmra.mxu0 %v113
      %v165 = vpop.f32.mrf.mxu0
      %v166 = vadd.f32 0.0, %v165
      %167 = vmatmul.f32.gmra.mxu0 %v116
      %v168 = vpop.f32.mrf.mxu0
      %v169 = vadd.f32 0.0, %v168
      %170 = vmatmul.f32.gmra.mxu0 %v119
      %v171 = vpop.f32.mrf.mxu0
      %v172 = vadd.f32 0.0, %v171
      %173 = vmatmul.f32.gmra.mxu0 %v122
      %v174 = vpop.f32.mrf.mxu0
      %v175 = vadd.f32 0.0, %v174
      %176 = vdwg.mxu0
      %177 = vst [vmem:[#allocation3] sm:$0xff] %v142
      %178 = vst [vmem:[#allocation3 + $0x8] sm:$0xff] %v145
      %179 = vst [vmem:[#allocation3 + $0x10] sm:$0xff] %v148
      %180 = vst [vmem:[#allocation3 + $0x18] sm:$0xff] %v151
      %181 = vst [vmem:[#allocation3 + $0x20] sm:$0xff] %v154
      %182 = vst [vmem:[#allocation3 + $0x28] sm:$0xff] %v157
      %183 = vst [vmem:[#allocation3 + $0x30] sm:$0xff] %v160
      %184 = vst [vmem:[#allocation3 + $0x38] sm:$0xff] %v163
      %185 = vst [vmem:[#allocation3 + $0x40] sm:$0xff] %v166
      %186 = vst [vmem:[#allocation3 + $0x48] sm:$0xff] %v169
      %187 = vst [vmem:[#allocation3 + $0x50] sm:$0xff] %v172
      %188 = vst [vmem:[#allocation3 + $0x58] sm:$0xff] %v175
      loop: start=0, step=1, limit=12
      $region29: #{tpu_custom_call.1} parent=27 // loop_pre_header
        _
      $region30: #{tpu_custom_call.1} parent=27 // loop_header
        %s190 = sphi 0, %s194
        %p191 = scmp.ge.s32.totalorder %s190, 12
        %v195 = vphi 0.0, %v988
      $region31: #{tpu_custom_call.1} parent=27 // loop_header_branch
        %193 = sbr.rel (%p191) target = $region35
      $region32: #{tpu_custom_call.1} parent=27 // loop_body
        %s196 = smul.u32 %s190, 8
        %s197 = scalar_lea.vmem [#allocation3], %s196
        %v198 = vld [vmem:[%s197] sm:$0xff]
        %s199 = scalar_lea.vmem [#allocation2], %s196
        %v200 = vld [vmem:[%s199] sm:$0xff]
        %s201 = scalar_lea.vmem %s3, %s196
        %v202 = vld [vmem:[%s201] sm:$0xff]
        %s203 = smul.u32 %s190, 64
        %v204 = vmul.f32 %v198, %v198
        %205 = vrot.lane.b32.xlu0 %v204, 8
        %v206 = vpop.permute.xlu0 %205
        %v207 = vadd.f32 %v204, %v206
        %208 = vrot.lane.b32.xlu0 %v207, 16
        %v209 = vpop.permute.xlu0 %208
        %v210 = vadd.f32 %v207, %v209
        %211 = vrot.lane.b32.xlu0 %v210, 32
        %v212 = vpop.permute.xlu0 %211
        %v213 = vadd.f32 %v210, %v212
        %214 = vrot.lane.b32.xlu0 %v213, 64
        %v215 = vpop.permute.xlu0 %214
        %v216 = vadd.f32 %v213, %v215
        %v217 = vmax.f32 %v216, 1e-30
        %v218 = vrsqrt.pop %v217
        %v219 = vmul.f32 %v218, %v217
        %v220 = vmul.f32 %v219, %v218
        %v221 = vmul.f32 0.5, %v220
        %v222 = vsub.f32 1.5, %v221
        %v223 = vmul.f32 %v218, %v222
        %vm224 = vweird.f32 %v217
        %vm225 = vweird.f32 %v218
        %vm226 = vmor %vm224, %vm225
        %v227 = vsel %vm226, %v218, %v223
        %vm228 = vcmp.gt.f32.partialorder %v216, 1e-20
        %v229 = vsub.f32 0.0, %v198
        %v230 = vmul.f32 %v229, %v227
        %v231 = vsel %vm228, %v230, %v200
        %v232 = vsub.f32 %v231, %v200
        %v233 = vmul.f32 %v202, %v232
        %234 = vst [vmem:[#allocation4] sm:$0x1] %v233
        %s235 = sadd.s32 %s203, 8
        %s236 = sld [smem:[#allocation7 + %s235]]
        %v237 = vstv %s236
        %v238 = vmul.f32 %v237, %v233
        %v240 = vrot.slane %v238, 7
        %v242 = vadd.f32 %v198, %v240
        %s243 = sadd.s32 %s203, 16
        %s244 = sld [smem:[#allocation7 + %s243]]
        %v245 = vstv %s244
        %v246 = vmul.f32 %v245, %v233
        %v248 = vrot.slane %v246, 6
        %v250 = vadd.f32 %v198, %v248
        %s251 = sadd.s32 %s203, 24
        %s252 = sld [smem:[#allocation7 + %s251]]
        %v253 = vstv %s252
        %v254 = vmul.f32 %v253, %v233
        %v256 = vrot.slane %v254, 5
        %v258 = vadd.f32 %v198, %v256
        %s259 = sadd.s32 %s203, 32
        %s260 = sld [smem:[#allocation7 + %s259]]
        %v261 = vstv %s260
        %v262 = vmul.f32 %v261, %v233
        %v264 = vrot.slane %v262, 4
        %v266 = vadd.f32 %v198, %v264
        %s267 = sadd.s32 %s203, 40
        %s268 = sld [smem:[#allocation7 + %s267]]
        %v269 = vstv %s268
        %v270 = vmul.f32 %v269, %v233
        %v272 = vrot.slane %v270, 3
        %v274 = vadd.f32 %v198, %v272
        %s275 = sadd.s32 %s203, 48
        %s276 = sld [smem:[#allocation7 + %s275]]
        %v277 = vstv %s276
        %v278 = vmul.f32 %v277, %v233
        %v280 = vrot.slane %v278, 2
        %v282 = vadd.f32 %v198, %v280
        %s283 = sadd.s32 %s203, 56
        %s284 = sld [smem:[#allocation7 + %s283]]
        %v285 = vstv %s284
        %v286 = vmul.f32 %v285, %v233
        %v288 = vrot.slane %v286, 1
        %v290 = vadd.f32 %v198, %v288
        %v291 = vmul.f32 %v242, %v242
        %v293 = vrot.slane %v291, 1
        %295 = vrot.lane.b32.xlu0 %v293, 8
        %v296 = vpop.permute.xlu0 %295
        %v298 = vrot.slane %v296, 7
        %v300 = vadd.f32 %v291, %v298
        %v302 = vrot.slane %v300, 1
        %304 = vrot.lane.b32.xlu0 %v302, 16
        %v305 = vpop.permute.xlu0 %304
        %v307 = vrot.slane %v305, 7
        %v309 = vadd.f32 %v300, %v307
        %v311 = vrot.slane %v309, 1
        %313 = vrot.lane.b32.xlu0 %v311, 32
        %v314 = vpop.permute.xlu0 %313
        %v316 = vrot.slane %v314, 7
        %v318 = vadd.f32 %v309, %v316
        %v320 = vrot.slane %v318, 1
        %322 = vrot.lane.b32.xlu0 %v320, 64
        %v323 = vpop.permute.xlu0 %322
        %v325 = vrot.slane %v323, 7
        %v327 = vadd.f32 %v318, %v325
        %v328 = vmax.f32 %v327, 1e-30
        %v329 = vrsqrt.pop %v328
        %v330 = vmul.f32 %v329, %v328
        %v331 = vmul.f32 %v330, %v329
        %v332 = vmul.f32 0.5, %v331
        %v333 = vsub.f32 1.5, %v332
        %v334 = vmul.f32 %v329, %v333
        %vm335 = vweird.f32 %v328
        %vm336 = vweird.f32 %v329
        %vm337 = vmor %vm335, %vm336
        %v338 = vsel %vm337, %v329, %v334
        %vm339 = vcmp.gt.f32.partialorder %v327, 1e-20
        %v340 = vsub.f32 0.0, %v242
        %v341 = vmul.f32 %v340, %v338
        %v342 = vsel %vm339, %v341, %v200
        %v343 = vsub.f32 %v342, %v200
        %v344 = vmul.f32 %v202, %v343
        %345 = vst [vmem:[#allocation4] sm:$0x2] %v344
        %s346 = sadd.s32 %s203, 17
        %s347 = sld [smem:[#allocation7 + %s346]]
        %v348 = vstv %s347
        %v349 = vmul.f32 %v348, %v344
        %v351 = vrot.slane %v349, 7
        %v353 = vadd.f32 %v250, %v351
        %s354 = sadd.s32 %s203, 25
        %s355 = sld [smem:[#allocation7 + %s354]]
        %v356 = vstv %s355
        %v357 = vmul.f32 %v356, %v344
        %v359 = vrot.slane %v357, 6
        %v361 = vadd.f32 %v258, %v359
        %s362 = sadd.s32 %s203, 33
        %s363 = sld [smem:[#allocation7 + %s362]]
        %v364 = vstv %s363
        %v365 = vmul.f32 %v364, %v344
        %v367 = vrot.slane %v365, 5
        %v369 = vadd.f32 %v266, %v367
        %s370 = sadd.s32 %s203, 41
        %s371 = sld [smem:[#allocation7 + %s370]]
        %v372 = vstv %s371
        %v373 = vmul.f32 %v372, %v344
        %v375 = vrot.slane %v373, 4
        %v377 = vadd.f32 %v274, %v375
        %s378 = sadd.s32 %s203, 49
        %s379 = sld [smem:[#allocation7 + %s378]]
        %v380 = vstv %s379
        %v381 = vmul.f32 %v380, %v344
        %v383 = vrot.slane %v381, 3
        %v385 = vadd.f32 %v282, %v383
        %s386 = sadd.s32 %s203, 57
        %s387 = sld [smem:[#allocation7 + %s386]]
        %v388 = vstv %s387
        %v389 = vmul.f32 %v388, %v344
        %v391 = vrot.slane %v389, 2
        %v393 = vadd.f32 %v290, %v391
        %v394 = vmul.f32 %v353, %v353
        %v396 = vrot.slane %v394, 2
        %398 = vrot.lane.b32.xlu0 %v396, 8
        %v399 = vpop.permute.xlu0 %398
        %v401 = vrot.slane %v399, 6
        %v403 = vadd.f32 %v394, %v401
        %v405 = vrot.slane %v403, 2
        %407 = vrot.lane.b32.xlu0 %v405, 16
        %v408 = vpop.permute.xlu0 %407
        %v410 = vrot.slane %v408, 6
        %v412 = vadd.f32 %v403, %v410
        %v414 = vrot.slane %v412, 2
        %416 = vrot.lane.b32.xlu0 %v414, 32
        %v417 = vpop.permute.xlu0 %416
        %v419 = vrot.slane %v417, 6
        %v421 = vadd.f32 %v412, %v419
        %v423 = vrot.slane %v421, 2
        %425 = vrot.lane.b32.xlu0 %v423, 64
        %v426 = vpop.permute.xlu0 %425
        %v428 = vrot.slane %v426, 6
        %v430 = vadd.f32 %v421, %v428
        %v431 = vmax.f32 %v430, 1e-30
        %v432 = vrsqrt.pop %v431
        %v433 = vmul.f32 %v432, %v431
        %v434 = vmul.f32 %v433, %v432
        %v435 = vmul.f32 0.5, %v434
        %v436 = vsub.f32 1.5, %v435
        %v437 = vmul.f32 %v432, %v436
        %vm438 = vweird.f32 %v431
        %vm439 = vweird.f32 %v432
        %vm440 = vmor %vm438, %vm439
        %v441 = vsel %vm440, %v432, %v437
        %vm442 = vcmp.gt.f32.partialorder %v430, 1e-20
        %v443 = vsub.f32 0.0, %v353
        %v444 = vmul.f32 %v443, %v441
        %v445 = vsel %vm442, %v444, %v200
        %v446 = vsub.f32 %v445, %v200
        %v447 = vmul.f32 %v202, %v446
        %448 = vst [vmem:[#allocation4] sm:$0x4] %v447
        %s449 = sadd.s32 %s203, 26
        %s450 = sld [smem:[#allocation7 + %s449]]
        %v451 = vstv %s450
        %v452 = vmul.f32 %v451, %v447
        %v454 = vrot.slane %v452, 7
        %v456 = vadd.f32 %v361, %v454
        %s457 = sadd.s32 %s203, 34
        %s458 = sld [smem:[#allocation7 + %s457]]
        %v459 = vstv %s458
        %v460 = vmul.f32 %v459, %v447
        %v462 = vrot.slane %v460, 6
        %v464 = vadd.f32 %v369, %v462
        %s465 = sadd.s32 %s203, 42
        %s466 = sld [smem:[#allocation7 + %s465]]
        %v467 = vstv %s466
        %v468 = vmul.f32 %v467, %v447
        %v470 = vrot.slane %v468, 5
        %v472 = vadd.f32 %v377, %v470
        %s473 = sadd.s32 %s203, 50
        %s474 = sld [smem:[#allocation7 + %s473]]
        %v475 = vstv %s474
        %v476 = vmul.f32 %v475, %v447
        %v478 = vrot.slane %v476, 4
        %v480 = vadd.f32 %v385, %v478
        %s481 = sadd.s32 %s203, 58
        %s482 = sld [smem:[#allocation7 + %s481]]
        %v483 = vstv %s482
        %v484 = vmul.f32 %v483, %v447
        %v486 = vrot.slane %v484, 3
        %v488 = vadd.f32 %v393, %v486
        %v489 = vmul.f32 %v456, %v456
        %v491 = vrot.slane %v489, 3
        %493 = vrot.lane.b32.xlu0 %v491, 8
        %v494 = vpop.permute.xlu0 %493
        %v496 = vrot.slane %v494, 5
        %v498 = vadd.f32 %v489, %v496
        %v500 = vrot.slane %v498, 3
        %502 = vrot.lane.b32.xlu0 %v500, 16
        %v503 = vpop.permute.xlu0 %502
        %v505 = vrot.slane %v503, 5
        %v507 = vadd.f32 %v498, %v505
        %v509 = vrot.slane %v507, 3
        %511 = vrot.lane.b32.xlu0 %v509, 32
        %v512 = vpop.permute.xlu0 %511
        %v514 = vrot.slane %v512, 5
        %v516 = vadd.f32 %v507, %v514
        %v518 = vrot.slane %v516, 3
        %520 = vrot.lane.b32.xlu0 %v518, 64
        %v521 = vpop.permute.xlu0 %520
        %v523 = vrot.slane %v521, 5
        %v525 = vadd.f32 %v516, %v523
        %v526 = vmax.f32 %v525, 1e-30
        %v527 = vrsqrt.pop %v526
        %v528 = vmul.f32 %v527, %v526
        %v529 = vmul.f32 %v528, %v527
        %v530 = vmul.f32 0.5, %v529
        %v531 = vsub.f32 1.5, %v530
        %v532 = vmul.f32 %v527, %v531
        %vm533 = vweird.f32 %v526
        %vm534 = vweird.f32 %v527
        %vm535 = vmor %vm533, %vm534
        %v536 = vsel %vm535, %v527, %v532
        %vm537 = vcmp.gt.f32.partialorder %v525, 1e-20
        %v538 = vsub.f32 0.0, %v456
        %v539 = vmul.f32 %v538, %v536
        %v540 = vsel %vm537, %v539, %v200
        %v541 = vsub.f32 %v540, %v200
        %v542 = vmul.f32 %v202, %v541
        %543 = vst [vmem:[#allocation4] sm:$0x8] %v542
        %s544 = sadd.s32 %s203, 35
        %s545 = sld [smem:[#allocation7 + %s544]]
        %v546 = vstv %s545
        %v547 = vmul.f32 %v546, %v542
        %v549 = vrot.slane %v547, 7
        %v551 = vadd.f32 %v464, %v549
        %s552 = sadd.s32 %s203, 43
        %s553 = sld [smem:[#allocation7 + %s552]]
        %v554 = vstv %s553
        %v555 = vmul.f32 %v554, %v542
        %v557 = vrot.slane %v555, 6
        %v559 = vadd.f32 %v472, %v557
        %s560 = sadd.s32 %s203, 51
        %s561 = sld [smem:[#allocation7 + %s560]]
        %v562 = vstv %s561
        %v563 = vmul.f32 %v562, %v542
        %v565 = vrot.slane %v563, 5
        %v567 = vadd.f32 %v480, %v565
        %s568 = sadd.s32 %s203, 59
        %s569 = sld [smem:[#allocation7 + %s568]]
        %v570 = vstv %s569
        %v571 = vmul.f32 %v570, %v542
        %v573 = vrot.slane %v571, 4
        %v575 = vadd.f32 %v488, %v573
        %v576 = vmul.f32 %v551, %v551
        %v578 = vrot.slane %v576, 4
        %580 = vrot.lane.b32.xlu0 %v578, 8
        %v581 = vpop.permute.xlu0 %580
        %v583 = vrot.slane %v581, 4
        %v585 = vadd.f32 %v576, %v583
        %v587 = vrot.slane %v585, 4
        %589 = vrot.lane.b32.xlu0 %v587, 16
        %v590 = vpop.permute.xlu0 %589
        %v592 = vrot.slane %v590, 4
        %v594 = vadd.f32 %v585, %v592
        %v596 = vrot.slane %v594, 4
        %598 = vrot.lane.b32.xlu0 %v596, 32
        %v599 = vpop.permute.xlu0 %598
        %v601 = vrot.slane %v599, 4
        %v603 = vadd.f32 %v594, %v601
        %v605 = vrot.slane %v603, 4
        %607 = vrot.lane.b32.xlu0 %v605, 64
        %v608 = vpop.permute.xlu0 %607
        %v610 = vrot.slane %v608, 4
        %v612 = vadd.f32 %v603, %v610
        %v613 = vmax.f32 %v612, 1e-30
        %v614 = vrsqrt.pop %v613
        %v615 = vmul.f32 %v614, %v613
        %v616 = vmul.f32 %v615, %v614
        %v617 = vmul.f32 0.5, %v616
        %v618 = vsub.f32 1.5, %v617
        %v619 = vmul.f32 %v614, %v618
        %vm620 = vweird.f32 %v613
        %vm621 = vweird.f32 %v614
        %vm622 = vmor %vm620, %vm621
        %v623 = vsel %vm622, %v614, %v619
        %vm624 = vcmp.gt.f32.partialorder %v612, 1e-20
        %v625 = vsub.f32 0.0, %v551
        %v626 = vmul.f32 %v625, %v623
        %v627 = vsel %vm624, %v626, %v200
        %v628 = vsub.f32 %v627, %v200
        %v629 = vmul.f32 %v202, %v628
        %630 = vst [vmem:[#allocation4] sm:$0x10] %v629
        %s631 = sadd.s32 %s203, 44
        %s632 = sld [smem:[#allocation7 + %s631]]
        %v633 = vstv %s632
        %v634 = vmul.f32 %v633, %v629
        %v636 = vrot.slane %v634, 7
        %v638 = vadd.f32 %v559, %v636
        %s639 = sadd.s32 %s203, 52
        %s640 = sld [smem:[#allocation7 + %s639]]
        %v641 = vstv %s640
        %v642 = vmul.f32 %v641, %v629
        %v644 = vrot.slane %v642, 6
        %v646 = vadd.f32 %v567, %v644
        %s647 = sadd.s32 %s203, 60
        %s648 = sld [smem:[#allocation7 + %s647]]
        %v649 = vstv %s648
        %v650 = vmul.f32 %v649, %v629
        %v652 = vrot.slane %v650, 5
        %v654 = vadd.f32 %v575, %v652
        %v655 = vmul.f32 %v638, %v638
        %v657 = vrot.slane %v655, 5
        %659 = vrot.lane.b32.xlu0 %v657, 8
        %v660 = vpop.permute.xlu0 %659
        %v662 = vrot.slane %v660, 3
        %v664 = vadd.f32 %v655, %v662
        %v666 = vrot.slane %v664, 5
        %668 = vrot.lane.b32.xlu0 %v666, 16
        %v669 = vpop.permute.xlu0 %668
        %v671 = vrot.slane %v669, 3
        %v673 = vadd.f32 %v664, %v671
        %v675 = vrot.slane %v673, 5
        %677 = vrot.lane.b32.xlu0 %v675, 32
        %v678 = vpop.permute.xlu0 %677
        %v680 = vrot.slane %v678, 3
        %v682 = vadd.f32 %v673, %v680
        %v684 = vrot.slane %v682, 5
        %686 = vrot.lane.b32.xlu0 %v684, 64
        %v687 = vpop.permute.xlu0 %686
        %v689 = vrot.slane %v687, 3
        %v691 = vadd.f32 %v682, %v689
        %v692 = vmax.f32 %v691, 1e-30
        %v693 = vrsqrt.pop %v692
        %v694 = vmul.f32 %v693, %v692
        %v695 = vmul.f32 %v694, %v693
        %v696 = vmul.f32 0.5, %v695
        %v697 = vsub.f32 1.5, %v696
        %v698 = vmul.f32 %v693, %v697
        %vm699 = vweird.f32 %v692
        %vm700 = vweird.f32 %v693
        %vm701 = vmor %vm699, %vm700
        %v702 = vsel %vm701, %v693, %v698
        %vm703 = vcmp.gt.f32.partialorder %v691, 1e-20
        %v704 = vsub.f32 0.0, %v638
        %v705 = vmul.f32 %v704, %v702
        %v706 = vsel %vm703, %v705, %v200
        %v707 = vsub.f32 %v706, %v200
        %v708 = vmul.f32 %v202, %v707
        %709 = vst [vmem:[#allocation4] sm:$0x20] %v708
        %s710 = sadd.s32 %s203, 53
        %s711 = sld [smem:[#allocation7 + %s710]]
        %v712 = vstv %s711
        %v713 = vmul.f32 %v712, %v708
        %v715 = vrot.slane %v713, 7
        %v717 = vadd.f32 %v646, %v715
        %s718 = sadd.s32 %s203, 61
        %s719 = sld [smem:[#allocation7 + %s718]]
        %v720 = vstv %s719
        %v721 = vmul.f32 %v720, %v708
        %v723 = vrot.slane %v721, 6
        %v725 = vadd.f32 %v654, %v723
        %v726 = vmul.f32 %v717, %v717
        %v728 = vrot.slane %v726, 6
        %730 = vrot.lane.b32.xlu0 %v728, 8
        %v731 = vpop.permute.xlu0 %730
        %v733 = vrot.slane %v731, 2
        %v735 = vadd.f32 %v726, %v733
        %v737 = vrot.slane %v735, 6
        %739 = vrot.lane.b32.xlu0 %v737, 16
        %v740 = vpop.permute.xlu0 %739
        %v742 = vrot.slane %v740, 2
        %v744 = vadd.f32 %v735, %v742
        %v746 = vrot.slane %v744, 6
        %748 = vrot.lane.b32.xlu0 %v746, 32
        %v749 = vpop.permute.xlu0 %748
        %v751 = vrot.slane %v749, 2
        %v753 = vadd.f32 %v744, %v751
        %v755 = vrot.slane %v753, 6
        %757 = vrot.lane.b32.xlu0 %v755, 64
        %v758 = vpop.permute.xlu0 %757
        %v760 = vrot.slane %v758, 2
        %v762 = vadd.f32 %v753, %v760
        %v763 = vmax.f32 %v762, 1e-30
        %v764 = vrsqrt.pop %v763
        %v765 = vmul.f32 %v764, %v763
        %v766 = vmul.f32 %v765, %v764
        %v767 = vmul.f32 0.5, %v766
        %v768 = vsub.f32 1.5, %v767
        %v769 = vmul.f32 %v764, %v768
        %vm770 = vweird.f32 %v763
        %vm771 = vweird.f32 %v764
        %vm772 = vmor %vm770, %vm771
        %v773 = vsel %vm772, %v764, %v769
        %vm774 = vcmp.gt.f32.partialorder %v762, 1e-20
        %v775 = vsub.f32 0.0, %v717
        %v776 = vmul.f32 %v775, %v773
        %v777 = vsel %vm774, %v776, %v200
        %v778 = vsub.f32 %v777, %v200
        %v779 = vmul.f32 %v202, %v778
        %780 = vst [vmem:[#allocation4] sm:$0x40] %v779
        %s781 = sadd.s32 %s203, 62
        %s782 = sld [smem:[#allocation7 + %s781]]
        %v783 = vstv %s782
        %v784 = vmul.f32 %v783, %v779
        %v786 = vrot.slane %v784, 7
        %v788 = vadd.f32 %v725, %v786
        %v789 = vmul.f32 %v788, %v788
        %v791 = vrot.slane %v789, 7
        %793 = vrot.lane.b32.xlu0 %v791, 8
        %v794 = vpop.permute.xlu0 %793
        %v796 = vrot.slane %v794, 1
        %v798 = vadd.f32 %v789, %v796
        %v800 = vrot.slane %v798, 7
        %802 = vrot.lane.b32.xlu0 %v800, 16
        %v803 = vpop.permute.xlu0 %802
        %v805 = vrot.slane %v803, 1
        %v807 = vadd.f32 %v798, %v805
        %v809 = vrot.slane %v807, 7
        %811 = vrot.lane.b32.xlu0 %v809, 32
        %v812 = vpop.permute.xlu0 %811
        %v814 = vrot.slane %v812, 1
        %v816 = vadd.f32 %v807, %v814
        %v818 = vrot.slane %v816, 7
        %820 = vrot.lane.b32.xlu0 %v818, 64
        %v821 = vpop.permute.xlu0 %820
        %v823 = vrot.slane %v821, 1
        %v825 = vadd.f32 %v816, %v823
        %v826 = vmax.f32 %v825, 1e-30
        %v827 = vrsqrt.pop %v826
        %v828 = vmul.f32 %v827, %v826
        %v829 = vmul.f32 %v828, %v827
        %v830 = vmul.f32 0.5, %v829
        %v831 = vsub.f32 1.5, %v830
        %v832 = vmul.f32 %v827, %v831
        %vm833 = vweird.f32 %v826
        %vm834 = vweird.f32 %v827
        %vm835 = vmor %vm833, %vm834
        %v836 = vsel %vm835, %v827, %v832
        %vm837 = vcmp.gt.f32.partialorder %v825, 1e-20
        %v838 = vsub.f32 0.0, %v788
        %v839 = vmul.f32 %v838, %v836
        %v840 = vsel %vm837, %v839, %v200
        %v841 = vsub.f32 %v840, %v200
        %v842 = vmul.f32 %v202, %v841
        %843 = vst [vmem:[#allocation4] sm:$0x80] %v842
        %v844 = vld [vmem:[#allocation4] sm:$0xff]
        %v845 = vadd.f32 %v200, %v844
        %846 = vst [vmem:[%s199] sm:$0xff] %v845
        %v847 = vld [vmem:[#allocation3] sm:$0xff]
        %v848 = vld [vmem:[#allocation3 + $0x8] sm:$0xff]
        %v849 = vld [vmem:[#allocation3 + $0x10] sm:$0xff]
        %v850 = vld [vmem:[#allocation3 + $0x18] sm:$0xff]
        %v851 = vld [vmem:[#allocation3 + $0x20] sm:$0xff]
        %v852 = vld [vmem:[#allocation3 + $0x28] sm:$0xff]
        %v853 = vld [vmem:[#allocation3 + $0x30] sm:$0xff]
        %v854 = vld [vmem:[#allocation3 + $0x38] sm:$0xff]
        %v855 = vld [vmem:[#allocation3 + $0x40] sm:$0xff]
        %v856 = vld [vmem:[#allocation3 + $0x48] sm:$0xff]
        %v857 = vld [vmem:[#allocation3 + $0x50] sm:$0xff]
        %v858 = vld [vmem:[#allocation3 + $0x58] sm:$0xff]
        %s859 = smul.u32 %s190, 96
        %s860 = scalar_lea.vmem %s2, %s859
        %v861 = vld [vmem:[%s860] sm:$0xff]
        %v862 = vld [vmem:[%s860 + $0x8] sm:$0xff]
        %v863 = vld [vmem:[%s860 + $0x10] sm:$0xff]
        %v864 = vld [vmem:[%s860 + $0x18] sm:$0xff]
        %v865 = vld [vmem:[%s860 + $0x20] sm:$0xff]
        %v866 = vld [vmem:[%s860 + $0x28] sm:$0xff]
        %v867 = vld [vmem:[%s860 + $0x30] sm:$0xff]
        %v868 = vld [vmem:[%s860 + $0x38] sm:$0xff]
        %v869 = vld [vmem:[%s860 + $0x40] sm:$0xff]
        %v870 = vld [vmem:[%s860 + $0x48] sm:$0xff]
        %v871 = vld [vmem:[%s860 + $0x50] sm:$0xff]
        %v872 = vld [vmem:[%s860 + $0x58] sm:$0xff]
        %vm873 = vcmask 64512
        %v875 = vsel %vm873, %v861, 0
        %v878 = vsel %vm873, %v862, 0
        %v881 = vsel %vm873, %v863, 0
        %v884 = vsel %vm873, %v864, 0
        %v887 = vsel %vm873, %v865, 0
        %v890 = vsel %vm873, %v866, 0
        %v893 = vsel %vm873, %v867, 0
        %v896 = vsel %vm873, %v868, 0
        %v899 = vsel %vm873, %v869, 0
        %v902 = vsel %vm873, %v870, 0
        %v905 = vsel %vm873, %v871, 0
        %v908 = vsel %vm873, %v872, 0
        %910 = vmatpush.msra.mxu0 0.0
        %911 = vmatpush.msra.mxu0 0.0
        %912 = vmatpush.msra.mxu0 0.0
        %913 = vmatpush.msra.mxu0 0.0
        %914 = vmatpush.msra.mxu0 0.0
        %915 = vmatpush.msra.mxu0 0.0
        %916 = vmatpush.msra.mxu0 0.0
        %917 = vmatpush.msra.mxu0 0.0
        %918 = vmatpush.msra.mxu0 0.0
        %919 = vmatpush.msra.mxu0 0.0
        %920 = vmatpush.msra.mxu0 0.0
        %921 = vmatpush.msra.mxu0 0.0
        %922 = vmatpush.msra.mxu0 0.0
        %923 = vmatpush.msra.mxu0 0.0
        %924 = vmatpush.msra.mxu0 0.0
        %925 = vmatpush.msra.mxu0 %v844
        %926 = vmatmul.f32.gmra.mxu0 %v875
        %v927 = vpop.f32.mrf.mxu0
        %v928 = vadd.f32 0.0, %v927
        %929 = vmatmul.f32.gmra.mxu0 %v878
        %v930 = vpop.f32.mrf.mxu0
        %v931 = vadd.f32 0.0, %v930
        %932 = vmatmul.f32.gmra.mxu0 %v881
        %v933 = vpop.f32.mrf.mxu0
        %v934 = vadd.f32 0.0, %v933
        %935 = vmatmul.f32.gmra.mxu0 %v884
        %v936 = vpop.f32.mrf.mxu0
        %v937 = vadd.f32 0.0, %v936
        %938 = vmatmul.f32.gmra.mxu0 %v887
        %v939 = vpop.f32.mrf.mxu0
        %v940 = vadd.f32 0.0, %v939
        %941 = vmatmul.f32.gmra.mxu0 %v890
        %v942 = vpop.f32.mrf.mxu0
        %v943 = vadd.f32 0.0, %v942
        %944 = vmatmul.f32.gmra.mxu0 %v893
        %v945 = vpop.f32.mrf.mxu0
        %v946 = vadd.f32 0.0, %v945
        %947 = vmatmul.f32.gmra.mxu0 %v896
        %v948 = vpop.f32.mrf.mxu0
        %v949 = vadd.f32 0.0, %v948
        %950 = vmatmul.f32.gmra.mxu0 %v899
        %v951 = vpop.f32.mrf.mxu0
        %v952 = vadd.f32 0.0, %v951
        %953 = vmatmul.f32.gmra.mxu0 %v902
        %v954 = vpop.f32.mrf.mxu0
        %v955 = vadd.f32 0.0, %v954
        %956 = vmatmul.f32.gmra.mxu0 %v905
        %v957 = vpop.f32.mrf.mxu0
        %v958 = vadd.f32 0.0, %v957
        %959 = vmatmul.f32.gmra.mxu0 %v908
        %v960 = vpop.f32.mrf.mxu0
        %v961 = vadd.f32 0.0, %v960
        %962 = vdwg.mxu0
        %v963 = vadd.f32 %v847, %v928
        %v964 = vadd.f32 %v848, %v931
        %v965 = vadd.f32 %v849, %v934
        %v966 = vadd.f32 %v850, %v937
        %v967 = vadd.f32 %v851, %v940
        %v968 = vadd.f32 %v852, %v943
        %v969 = vadd.f32 %v853, %v946
        %v970 = vadd.f32 %v854, %v949
        %v971 = vadd.f32 %v855, %v952
        %v972 = vadd.f32 %v856, %v955
        %v973 = vadd.f32 %v857, %v958
        %v974 = vadd.f32 %v858, %v961
        %975 = vst [vmem:[#allocation3] sm:$0xff] %v963
        %976 = vst [vmem:[#allocation3 + $0x8] sm:$0xff] %v964
        %977 = vst [vmem:[#allocation3 + $0x10] sm:$0xff] %v965
        %978 = vst [vmem:[#allocation3 + $0x18] sm:$0xff] %v966
        %979 = vst [vmem:[#allocation3 + $0x20] sm:$0xff] %v967
        %980 = vst [vmem:[#allocation3 + $0x28] sm:$0xff] %v968
        %981 = vst [vmem:[#allocation3 + $0x30] sm:$0xff] %v969
        %982 = vst [vmem:[#allocation3 + $0x38] sm:$0xff] %v970
        %983 = vst [vmem:[#allocation3 + $0x40] sm:$0xff] %v971
        %984 = vst [vmem:[#allocation3 + $0x48] sm:$0xff] %v972
        %985 = vst [vmem:[#allocation3 + $0x50] sm:$0xff] %v973
        %986 = vst [vmem:[#allocation3 + $0x58] sm:$0xff] %v974
        %v987 = vmul.f32 %v844, %v844
        %v988 = vadd.f32 %v195, %v987
      $region33: #{tpu_custom_call.1} parent=27 // loop_footer
        %s194 = sadd.s32 1, %s190
      $region34: #{tpu_custom_call.1} parent=27 // loop_footer_branch
        %189 = sbr.rel target = $region30
      $region35: #{tpu_custom_call.1} parent=27 // loop_exit
        _
      %989 = vadd.xlane.f32.xlu0 %v195
      %v990 = vpop.xlane.xlu0 %989
      %v991 = vrot.slane %v990, 4
      %v992 = vadd.f32 %v990, %v991
      %v993 = vrot.slane %v992, 2
      %v994 = vadd.f32 %v992, %v993
      %v995 = vrot.slane %v994, 1
      %v996 = vadd.f32 %v994, %v995
      %s997 = vtos %v996
      %998 = sst [smem:[%s50]] %s997
    $region28: #{tpu_custom_call.1} parent=21 // pred_fallthru
      _
  $region22: #{tpu_custom_call.1} parent=0 // loop_footer
    %s57 = sadd.s32 1, %s53
  $region23: #{tpu_custom_call.1} parent=0 // loop_footer_branch
    %52 = sbr.rel target = $region19
  $region24: #{tpu_custom_call.1} parent=0 // loop_exit
    _
  %v999 = vld [vmem:[#allocation2] sm:$0xff]
  %v1000 = vld [vmem:[#allocation2 + $0x8] sm:$0xff]
  %v1001 = vld [vmem:[#allocation2 + $0x10] sm:$0xff]
  %v1002 = vld [vmem:[#allocation2 + $0x18] sm:$0xff]
  %v1003 = vld [vmem:[#allocation2 + $0x20] sm:$0xff]
  %v1004 = vld [vmem:[#allocation2 + $0x28] sm:$0xff]
  %v1005 = vld [vmem:[#allocation2 + $0x30] sm:$0xff]
  %v1006 = vld [vmem:[#allocation2 + $0x38] sm:$0xff]
  %v1007 = vld [vmem:[#allocation2 + $0x40] sm:$0xff]
  %v1008 = vld [vmem:[#allocation2 + $0x48] sm:$0xff]
  %v1009 = vld [vmem:[#allocation2 + $0x50] sm:$0xff]
  %v1010 = vld [vmem:[#allocation2 + $0x58] sm:$0xff]
  %v1011 = vperm.slane %v999, 0
  %v1012 = vmul.f32 %v999, %v1011
  %v1013 = vmul.f32 %v1000, %v1011
  %v1014 = vmul.f32 %v1001, %v1011
  %v1015 = vmul.f32 %v1002, %v1011
  %v1016 = vmul.f32 %v1003, %v1011
  %v1017 = vmul.f32 %v1004, %v1011
  %v1018 = vmul.f32 %v1005, %v1011
  %v1019 = vmul.f32 %v1006, %v1011
  %v1020 = vmul.f32 %v1007, %v1011
  %v1021 = vmul.f32 %v1008, %v1011
  %v1022 = vmul.f32 %v1009, %v1011
  %v1023 = vmul.f32 %v1010, %v1011
  %1024 = vrot.lane.b32.xlu0 %v1012, 8
  %v1025 = vpop.permute.xlu0 %1024
  %1026 = vrot.lane.b32.xlu0 %v1013, 8
  %v1027 = vpop.permute.xlu0 %1026
  %1028 = vrot.lane.b32.xlu0 %v1014, 8
  %v1029 = vpop.permute.xlu0 %1028
  %1030 = vrot.lane.b32.xlu0 %v1015, 8
  %v1031 = vpop.permute.xlu0 %1030
  %1032 = vrot.lane.b32.xlu0 %v1016, 8
  %v1033 = vpop.permute.xlu0 %1032
  %1034 = vrot.lane.b32.xlu0 %v1017, 8
  %v1035 = vpop.permute.xlu0 %1034
  %1036 = vrot.lane.b32.xlu0 %v1018, 8
  %v1037 = vpop.permute.xlu0 %1036
  %1038 = vrot.lane.b32.xlu0 %v1019, 8
  %v1039 = vpop.permute.xlu0 %1038
  %1040 = vrot.lane.b32.xlu0 %v1020, 8
  %v1041 = vpop.permute.xlu0 %1040
  %1042 = vrot.lane.b32.xlu0 %v1021, 8
  %v1043 = vpop.permute.xlu0 %1042
  %1044 = vrot.lane.b32.xlu0 %v1022, 8
  %v1045 = vpop.permute.xlu0 %1044
  %1046 = vrot.lane.b32.xlu0 %v1023, 8
  %v1047 = vpop.permute.xlu0 %1046
  %v1048 = vadd.f32 %v1012, %v1025
  %v1049 = vadd.f32 %v1013, %v1027
  %v1050 = vadd.f32 %v1014, %v1029
  %v1051 = vadd.f32 %v1015, %v1031
  %v1052 = vadd.f32 %v1016, %v1033
  %v1053 = vadd.f32 %v1017, %v1035
  %v1054 = vadd.f32 %v1018, %v1037
  %v1055 = vadd.f32 %v1019, %v1039
  %v1056 = vadd.f32 %v1020, %v1041
  %v1057 = vadd.f32 %v1021, %v1043
  %v1058 = vadd.f32 %v1022, %v1045
  %v1059 = vadd.f32 %v1023, %v1047
  %1060 = vrot.lane.b32.xlu0 %v1048, 16
  %v1061 = vpop.permute.xlu0 %1060
  %1062 = vrot.lane.b32.xlu0 %v1049, 16
  %v1063 = vpop.permute.xlu0 %1062
  %1064 = vrot.lane.b32.xlu0 %v1050, 16
  %v1065 = vpop.permute.xlu0 %1064
  %1066 = vrot.lane.b32.xlu0 %v1051, 16
  %v1067 = vpop.permute.xlu0 %1066
  %1068 = vrot.lane.b32.xlu0 %v1052, 16
  %v1069 = vpop.permute.xlu0 %1068
  %1070 = vrot.lane.b32.xlu0 %v1053, 16
  %v1071 = vpop.permute.xlu0 %1070
  %1072 = vrot.lane.b32.xlu0 %v1054, 16
  %v1073 = vpop.permute.xlu0 %1072
  %1074 = vrot.lane.b32.xlu0 %v1055, 16
  %v1075 = vpop.permute.xlu0 %1074
  %1076 = vrot.lane.b32.xlu0 %v1056, 16
  %v1077 = vpop.permute.xlu0 %1076
  %1078 = vrot.lane.b32.xlu0 %v1057, 16
  %v1079 = vpop.permute.xlu0 %1078
  %1080 = vrot.lane.b32.xlu0 %v1058, 16
  %v1081 = vpop.permute.xlu0 %1080
  %1082 = vrot.lane.b32.xlu0 %v1059, 16
  %v1083 = vpop.permute.xlu0 %1082
  %v1084 = vadd.f32 %v1048, %v1061
  %v1085 = vadd.f32 %v1049, %v1063
  %v1086 = vadd.f32 %v1050, %v1065
  %v1087 = vadd.f32 %v1051, %v1067
  %v1088 = vadd.f32 %v1052, %v1069
  %v1089 = vadd.f32 %v1053, %v1071
  %v1090 = vadd.f32 %v1054, %v1073
  %v1091 = vadd.f32 %v1055, %v1075
  %v1092 = vadd.f32 %v1056, %v1077
  %v1093 = vadd.f32 %v1057, %v1079
  %v1094 = vadd.f32 %v1058, %v1081
  %v1095 = vadd.f32 %v1059, %v1083
  %1096 = vrot.lane.b32.xlu0 %v1084, 32
  %v1097 = vpop.permute.xlu0 %1096
  %1098 = vrot.lane.b32.xlu0 %v1085, 32
  %v1099 = vpop.permute.xlu0 %1098
  %1100 = vrot.lane.b32.xlu0 %v1086, 32
  %v1101 = vpop.permute.xlu0 %1100
  %1102 = vrot.lane.b32.xlu0 %v1087, 32
  %v1103 = vpop.permute.xlu0 %1102
  %1104 = vrot.lane.b32.xlu0 %v1088, 32
  %v1105 = vpop.permute.xlu0 %1104
  %1106 = vrot.lane.b32.xlu0 %v1089, 32
  %v1107 = vpop.permute.xlu0 %1106
  %1108 = vrot.lane.b32.xlu0 %v1090, 32
  %v1109 = vpop.permute.xlu0 %1108
  %1110 = vrot.lane.b32.xlu0 %v1091, 32
  %v1111 = vpop.permute.xlu0 %1110
  %1112 = vrot.lane.b32.xlu0 %v1092, 32
  %v1113 = vpop.permute.xlu0 %1112
  %1114 = vrot.lane.b32.xlu0 %v1093, 32
  %v1115 = vpop.permute.xlu0 %1114
  %1116 = vrot.lane.b32.xlu0 %v1094, 32
  %v1117 = vpop.permute.xlu0 %1116
  %1118 = vrot.lane.b32.xlu0 %v1095, 32
  %v1119 = vpop.permute.xlu0 %1118
  %v1120 = vadd.f32 %v1084, %v1097
  %v1121 = vadd.f32 %v1085, %v1099
  %v1122 = vadd.f32 %v1086, %v1101
  %v1123 = vadd.f32 %v1087, %v1103
  %v1124 = vadd.f32 %v1088, %v1105
  %v1125 = vadd.f32 %v1089, %v1107
  %v1126 = vadd.f32 %v1090, %v1109
  %v1127 = vadd.f32 %v1091, %v1111
  %v1128 = vadd.f32 %v1092, %v1113
  %v1129 = vadd.f32 %v1093, %v1115
  %v1130 = vadd.f32 %v1094, %v1117
  %v1131 = vadd.f32 %v1095, %v1119
  %1132 = vrot.lane.b32.xlu0 %v1120, 64
  %v1133 = vpop.permute.xlu0 %1132
  %1134 = vrot.lane.b32.xlu0 %v1121, 64
  %v1135 = vpop.permute.xlu0 %1134
  %1136 = vrot.lane.b32.xlu0 %v1122, 64
  %v1137 = vpop.permute.xlu0 %1136
  %1138 = vrot.lane.b32.xlu0 %v1123, 64
  %v1139 = vpop.permute.xlu0 %1138
  %1140 = vrot.lane.b32.xlu0 %v1124, 64
  %v1141 = vpop.permute.xlu0 %1140
  %1142 = vrot.lane.b32.xlu0 %v1125, 64
  %v1143 = vpop.permute.xlu0 %1142
  %1144 = vrot.lane.b32.xlu0 %v1126, 64
  %v1145 = vpop.permute.xlu0 %1144
  %1146 = vrot.lane.b32.xlu0 %v1127, 64
  %v1147 = vpop.permute.xlu0 %1146
  %1148 = vrot.lane.b32.xlu0 %v1128, 64
  %v1149 = vpop.permute.xlu0 %1148
  %1150 = vrot.lane.b32.xlu0 %v1129, 64
  %v1151 = vpop.permute.xlu0 %1150
  %1152 = vrot.lane.b32.xlu0 %v1130, 64
  %v1153 = vpop.permute.xlu0 %1152
  %1154 = vrot.lane.b32.xlu0 %v1131, 64
  %v1155 = vpop.permute.xlu0 %1154
  %v1156 = vadd.f32 %v1120, %v1133
  %v1157 = vadd.f32 %v1121, %v1135
  %v1158 = vadd.f32 %v1122, %v1137
  %v1159 = vadd.f32 %v1123, %v1139
  %v1160 = vadd.f32 %v1124, %v1141
  %v1161 = vadd.f32 %v1125, %v1143
  %v1162 = vadd.f32 %v1126, %v1145
  %v1163 = vadd.f32 %v1127, %v1147
  %v1164 = vadd.f32 %v1128, %v1149
  %v1165 = vadd.f32 %v1129, %v1151
  %v1166 = vadd.f32 %v1130, %v1153
  %v1167 = vadd.f32 %v1131, %v1155
  %vm1168 = vcmask 64512
  %1169 = vst.msk [vmem:[%s5] sm:$0xff] %vm1168, %v1156
  %1170 = vst.msk [vmem:[%s5 + $0x8] sm:$0xff] %vm1168, %v1157
  %1171 = vst.msk [vmem:[%s5 + $0x10] sm:$0xff] %vm1168, %v1158
  %1172 = vst.msk [vmem:[%s5 + $0x18] sm:$0xff] %vm1168, %v1159
  %1173 = vst.msk [vmem:[%s5 + $0x20] sm:$0xff] %vm1168, %v1160
  %1174 = vst.msk [vmem:[%s5 + $0x28] sm:$0xff] %vm1168, %v1161
  %1175 = vst.msk [vmem:[%s5 + $0x30] sm:$0xff] %vm1168, %v1162
  %1176 = vst.msk [vmem:[%s5 + $0x38] sm:$0xff] %vm1168, %v1163
  %1177 = vst.msk [vmem:[%s5 + $0x40] sm:$0xff] %vm1168, %v1164
  %1178 = vst.msk [vmem:[%s5 + $0x48] sm:$0xff] %vm1168, %v1165
  %1179 = vst.msk [vmem:[%s5 + $0x50] sm:$0xff] %vm1168, %v1166
  %1180 = vst.msk [vmem:[%s5 + $0x58] sm:$0xff] %vm1168, %v1167
  // Predicated region
  $region36: #{tpu_custom_call.1} parent=0 // pred_check
    _
  $region37: #{tpu_custom_call.1} parent=0 // pred_check_branch
    %1182 = sbr.rel (0) target = $region39
  $region38: #{tpu_custom_call.1} parent=0 // pred_region
    _
  $region39: #{tpu_custom_call.1} parent=0 // pred_fallthru
    _
  // Predicated region
  $region40: #{tpu_custom_call.1} parent=0 // pred_check
    _
  $region41: #{tpu_custom_call.1} parent=0 // pred_check_branch
    %1184 = sbr.rel (0) target = $region43
  $region42: #{tpu_custom_call.1} parent=0 // pred_region
    _
  $region43: #{tpu_custom_call.1} parent=0 // pred_fallthru
    _

</llo_original>
